<compile_context>
chip_gen: v6e
topology: v6e:2x2x1
jax: 0.10.0
libtpu: 0.0.40
codegen_flags: <defaults>
</compile_context>

<pallas_src>
import math
import numpy as np

import jax
import jax.numpy as jnp
from jax.experimental import pallas as pl
from jax.experimental.pallas import tpu as pltpu


def _make_kernel(idx, na, nk, compute_dtype):
    """idx: host numpy (na, nk) gather table (static at trace time)."""

    def kernel(x_ref, w_ref, b_ref, o_ref, xg_ref):
        # Stage the gathered MXU operands once per m-tile; reused across nco blocks.
        @pl.when(pl.program_id(1) == 0)
        def _build():
            xv = x_ref[...]                              # (tile_np, na, nc)
            if xv.dtype != compute_dtype:
                xv = xv.astype(compute_dtype)
            for a in range(na):
                xg_ref[a] = jnp.concatenate(
                    [xv[:, int(idx[a, k]), :] for k in range(nk)], axis=-1)

        w = w_ref[...]                                   # (nk*nc, tile_nco)
        b = b_ref[...]                                   # (1, tile_nco), f32
        outs = []
        for a in range(na):
            y = jnp.dot(xg_ref[a], w, preferred_element_type=jnp.float32) + b
            outs.append(jnp.maximum(y, 0.1 * y).astype(o_ref.dtype))  # LeakyReLU(0.1)
        o_ref[...] = jnp.stack(outs, axis=1)             # (tile_np, na, tile_nco)

    return kernel


def _vmem_capacity_bytes():
    try:
        cap = getattr(pltpu.get_tpu_info(), "vmem_capacity_bytes", None)
        if cap:
            return int(cap)
    except Exception:
        pass
    return 64 << 20          # conservative default = v7x per-TensorCore VMEM


def _pick_tiles(npts, na, nc, nk, nco, x_isz, cmp_isz, out_isz, budget):
    """Pick (tile_np, tile_nco) so all (double-buffered) blocks fit the VMEM budget."""
    kd = nk * nc

    # nco (weight-column) blocking: stream 128-lane weight blocks when the resident,
    # double-buffered weights would eat more than ~1/3 of the budget.
    w_budget = max(budget // 3, 1 << 20)
    if nco <= 128 or 2 * kd * nco * cmp_isz <= w_budget:
        tile_nco = nco
    else:
        tile_nco = (w_budget // (2 * kd * cmp_isz)) // 128 * 128
        tile_nco = int(min(max(tile_nco, 128), nco))
        # TODO(synk): if even a 128-wide weight block blows the budget (huge nk*nc), a
        # K-axis reduction grid with an f32 accumulator scratch would be needed.
    w_bytes = 2 * kd * tile_nco * cmp_isz

    def need(tp):
        tm = tp * na
        return (2 * tp * na * nc * x_isz          # double-buffered x tiles
                + tm * kd * cmp_isz               # gathered-operand scratch
                + tp * kd * cmp_isz               # concat temporaries
                + w_bytes                         # resident / streamed weight blocks
                + 2 * tm * tile_nco * out_isz     # double-buffered out tiles
                + 2 * tp * tile_nco * 4)          # f32 matmul + epilogue temps

    tp = 2048
    while tp > 8 and need(tp) > budget:
        tp //= 2
    tp = max(1, min(tp, npts))
    if tp >= 8:
        tp = (tp // 8) * 8                        # sublane-friendly
    # v7x has 2 TensorCores: give the parallel axis at least 2 grid steps.
    if npts > 1 and pl.cdiv(npts, tp) < 2:
        half = (npts + 1) // 2
        tp = ((half + 7) // 8) * 8 if half >= 8 else half
    return int(tp), int(tile_nco)


def kpconv_intra_so3_block(x, intra_idx, weights, bias, *,
                           tile_np=None, tile_nco=None, compute_dtype=None):
    """x: (np, na, nc); intra_idx: (na, nk) host-constant ints; weights: (nk, nc, nco);
    bias: (nco,).  Returns leaky_relu(conv(x) + bias, 0.1) of shape (np, na, nco)."""
    npts, na, nc = x.shape
    idx = np.asarray(jax.device_get(intra_idx)).astype(np.int64)   # static gather table
    assert idx.ndim == 2 and idx.shape[0] == na
    nk = idx.shape[1]
    assert idx.min() >= 0 and idx.max() < na
    nk_w, nc_w, nco = weights.shape
    assert (nk_w, nc_w) == (nk, nc)
    kd = nk * nc

    out_dtype = x.dtype
    if compute_dtype is None:
        # f32 = exact module semantics; pass jnp.bfloat16 on v6e/v7x for 2x MXU rate
        # and half the weight/operand VMEM traffic (f32 accumulation + f32 epilogue).
        compute_dtype = x.dtype
    compute_dtype = jnp.dtype(compute_dtype)
    x_isz = jnp.dtype(x.dtype).itemsize
    cmp_isz = compute_dtype.itemsize
    out_isz = jnp.dtype(out_dtype).itemsize

    vmem_cap = _vmem_capacity_bytes()
    budget = (vmem_cap * 7) // 10                 # leave compiler-scratch headroom
    auto_tp, auto_tnco = _pick_tiles(npts, na, nc, nk, nco,
                                     x_isz, cmp_isz, out_isz, budget)
    tile_np = max(1, int(min(tile_np, npts))) if tile_np else auto_tp
    tile_nco = int(min(tile_nco, nco)) if tile_nco else auto_tnco
    if tile_nco < nco:                            # streamed weight-column blocks must
        tile_nco = max(128, (tile_nco // 128) * 128)   # be 128-lane aligned
        tile_nco = min(tile_nco, nco)

    w_flat = weights.reshape(kd, nco).astype(compute_dtype)
    bias_row = jnp.asarray(bias, jnp.float32).reshape(1, nco)

    grid = (pl.cdiv(npts, tile_np), pl.cdiv(nco, tile_nco))
    tm = tile_np * na
    need_bytes = (2 * tile_np * na * nc * x_isz + tm * kd * cmp_isz
                  + tile_np * kd * cmp_isz + 2 * kd * tile_nco * cmp_isz
                  + 2 * tm * tile_nco * out_isz + 2 * tile_np * tile_nco * 4
                  + 4 * nco * 4)
    vmem_limit = int(min(vmem_cap, max(need_bytes + (8 << 20), 32 << 20)))

    kernel = _make_kernel(idx, na, nk, compute_dtype)
    return pl.pallas_call(
        kernel,
        out_shape=jax.ShapeDtypeStruct((npts, na, nco), out_dtype),
        grid_spec=pltpu.PrefetchScalarGridSpec(
            num_scalar_prefetch=0,
            grid=grid,
            in_specs=[
                # x streamed untouched; the anchor gather happens in VMEM in-kernel.
                pl.BlockSpec((tile_np, na, nc), lambda i, j: (i, 0, 0)),
                # flattened weights (nk*nc, nco): constant row block, nco-blocked cols.
                pl.BlockSpec((kd, tile_nco), lambda i, j: (0, j)),
                pl.BlockSpec((1, tile_nco), lambda i, j: (0, j)),
            ],
            out_specs=pl.BlockSpec((tile_np, na, tile_nco), lambda i, j: (i, 0, j)),
            scratch_shapes=[pltpu.VMEM((na, tile_np, kd), compute_dtype)],
        ),
        compiler_params=pltpu.CompilerParams(
            dimension_semantics=("parallel", "arbitrary"),
            vmem_limit_bytes=vmem_limit),
    )(x, w_flat, bias_row)


def _reference(x, intra_idx, weights, bias):
    xg = x[:, jnp.asarray(intra_idx), :]                 # (np, na, nk, nc)
    conv = jnp.einsum('pakc,kco->pao', xg, weights)      # matmul + sum over k
    y = conv + bias
    return jnp.where(y >= 0, y, 0.1 * y)                 # LeakyReLU(0.1)


if __name__ == "__main__":
    key = jax.random.PRNGKey(0)
    k_x, k_w, k_b, k_w2, k_b2 = jax.random.split(key, 5)

    # Small shapes consistent with the module: np points, kanchor anchors, nk intra
    # kernel points, in_dim -> out_dim channels.
    num_points, kanchor, nk, in_dim, out_dim = 32, 4, 3, 16, 32

    # deterministic synthetic intra_idx (values in [0, kanchor)), like L.get_intra_idx
    intra_idx = ((np.arange(kanchor)[:, None] + np.arange(nk)[None, :]) % kanchor
                 ).astype(np.int32)

    # weights: kaiming_uniform_(a=sqrt(5)) on (K, in, out): bound = 1/sqrt(in*out)
    bound = 1.0 / math.sqrt(in_dim * out_dim)
    weights = jax.random.uniform(k_w, (nk, in_dim, out_dim),
                                 minval=-bound, maxval=bound, dtype=jnp.float32)
    # BatchNormBlockEPN(use_bn=False): learned bias (init zeros; random here to test path)
    bias = 0.01 * jax.random.normal(k_b, (out_dim,), dtype=jnp.float32)
    x = jax.random.normal(k_x, (num_points, kanchor, in_dim), dtype=jnp.float32)

    ref = _reference(x, intra_idx, weights, bias)

    # f32 path (exact module semantics)
    out = jax.block_until_ready(kpconv_intra_so3_block(x, intra_idx, weights, bias))
    assert out.shape == (num_points, kanchor, out_dim)
    assert jnp.allclose(out, ref, atol=1e-5, rtol=1e-5)

    # ragged last m-tile (grid masking instead of pad + post-slice)
    out_rag = jax.block_until_ready(
        kpconv_intra_so3_block(x, intra_idx, weights, bias, tile_np=24))
    assert jnp.allclose(out_rag, ref, atol=1e-5, rtol=1e-5)

    # bf16-on-MXU path (f32 accumulation + f32 bias/LeakyReLU epilogue)
    out_bf16 = jax.block_until_ready(
        kpconv_intra_so3_block(x, intra_idx, weights, bias,
                               compute_dtype=jnp.bfloat16))
    assert jnp.allclose(out_bf16, ref, atol=5e-2, rtol=5e-2)

    # nco-blocked (streamed weight-column) fallback path on a wider out_dim.
    out_dim2 = 256
    bound2 = 1.0 / math.sqrt(in_dim * out_dim2)
    weights2 = jax.random.uniform(k_w2, (nk, in_dim, out_dim2),
                                  minval=-bound2, maxval=bound2, dtype=jnp.float32)
    bias_wide = 0.01 * jax.random.normal(k_b2, (out_dim2,), dtype=jnp.float32)
    ref2 = _reference(x, intra_idx, weights2, bias_wide)
    out2 = jax.block_until_ready(
        kpconv_intra_so3_block(x, intra_idx, weights2, bias_wide, tile_nco=128))
    assert jnp.allclose(out2, ref2, atol=1e-5, rtol=1e-5)

    print("KERNEL_OK")
</pallas_src>

<mosaic_0001>
module attributes {stable_mosaic.version = 11 : i64} {
  func.func @kernel(%arg0: i32, %arg1: i32, %arg2: memref<16x4x16xf32, #tpu.memory_space<vmem>>, %arg3: memref<48x32xf32, #tpu.memory_space<vmem>>, %arg4: memref<1x32xf32, #tpu.memory_space<vmem>>, %arg5: memref<16x4x32xf32, #tpu.memory_space<vmem>>, %arg6: memref<4x16x48xf32, #tpu.memory_space<vmem>>) attributes {dimension_semantics = [#tpu.dimension_semantics<parallel>, #tpu.dimension_semantics<arbitrary>], iteration_bounds = array<i64: 2, 1>, scalar_prefetch = 0 : i64, scratch_operands = 1 : i64, tpu.core_type = #tpu.core_type<tc>, window_params = [{transform_indices = @transform_0, window_bounds = array<i64: 16, 4, 16>}, {transform_indices = @transform_1, window_bounds = array<i64: 48, 32>}, {transform_indices = @transform_2, window_bounds = array<i64: 1, 32>}, {transform_indices = @transform_3, window_bounds = array<i64: 16, 4, 32>}]} {
    %c0_i32 = arith.constant 0 : i32
    %0 = arith.cmpi eq, %arg1, %c0_i32 : i32
    %1 = arith.extui %0 : i1 to i32
    %c0_i32_0 = arith.constant 0 : i32
    %2 = arith.cmpi ne, %1, %c0_i32_0 : i32
    scf.if %2 {
      %c0_23 = arith.constant 0 : index
      %c0_24 = arith.constant 0 : index
      %c0_25 = arith.constant 0 : index
      %43 = vector.load %arg2[%c0_23, %c0_24, %c0_25] : memref<16x4x16xf32, #tpu.memory_space<vmem>>, vector<16x4x16xf32>
      %44 = vector.extract_strided_slice %43 {offsets = [0, 0, 0], sizes = [16, 1, 16], strides = [1, 1, 1]} : vector<16x4x16xf32> to vector<16x1x16xf32>
      %45 = vector.shape_cast %44 : vector<16x1x16xf32> to vector<16x16xf32>
      %46 = vector.extract_strided_slice %43 {offsets = [0, 1, 0], sizes = [16, 1, 16], strides = [1, 1, 1]} : vector<16x4x16xf32> to vector<16x1x16xf32>
      %47 = vector.shape_cast %46 : vector<16x1x16xf32> to vector<16x16xf32>
      %48 = vector.extract_strided_slice %43 {offsets = [0, 2, 0], sizes = [16, 1, 16], strides = [1, 1, 1]} : vector<16x4x16xf32> to vector<16x1x16xf32>
      %49 = vector.shape_cast %48 : vector<16x1x16xf32> to vector<16x16xf32>
      %50 = tpu.concatenate %45, %47, %49 in 1 : vector<16x16xf32>, vector<16x16xf32>, vector<16x16xf32> -> vector<16x48xf32>
      %c0_26 = arith.constant 0 : index
      %c0_27 = arith.constant 0 : index
      %c0_28 = arith.constant 0 : index
      %51 = vector.load %arg6[%c0_26, %c0_27, %c0_28] : memref<4x16x48xf32, #tpu.memory_space<vmem>>, vector<1x16x48xf32>
      %52 = vector.shape_cast %51 : vector<1x16x48xf32> to vector<16x48xf32>
      %53 = vector.shape_cast %50 : vector<16x48xf32> to vector<1x16x48xf32>
      tpu.vector_store %arg6[%c0_26, %c0_27, %c0_28], %53 {strides = array<i32>} : memref<4x16x48xf32, #tpu.memory_space<vmem>>, vector<1x16x48xf32>,
      %54 = vector.extract_strided_slice %43 {offsets = [0, 1, 0], sizes = [16, 1, 16], strides = [1, 1, 1]} : vector<16x4x16xf32> to vector<16x1x16xf32>
      %55 = vector.shape_cast %54 : vector<16x1x16xf32> to vector<16x16xf32>
      %56 = vector.extract_strided_slice %43 {offsets = [0, 2, 0], sizes = [16, 1, 16], strides = [1, 1, 1]} : vector<16x4x16xf32> to vector<16x1x16xf32>
      %57 = vector.shape_cast %56 : vector<16x1x16xf32> to vector<16x16xf32>
      %58 = vector.extract_strided_slice %43 {offsets = [0, 3, 0], sizes = [16, 1, 16], strides = [1, 1, 1]} : vector<16x4x16xf32> to vector<16x1x16xf32>
      %59 = vector.shape_cast %58 : vector<16x1x16xf32> to vector<16x16xf32>
      %60 = tpu.concatenate %55, %57, %59 in 1 : vector<16x16xf32>, vector<16x16xf32>, vector<16x16xf32> -> vector<16x48xf32>
      %c1_29 = arith.constant 1 : index
      %c0_30 = arith.constant 0 : index
      %c0_31 = arith.constant 0 : index
      %61 = vector.load %arg6[%c1_29, %c0_30, %c0_31] : memref<4x16x48xf32, #tpu.memory_space<vmem>>, vector<1x16x48xf32>
      %62 = vector.shape_cast %61 : vector<1x16x48xf32> to vector<16x48xf32>
      %63 = vector.shape_cast %60 : vector<16x48xf32> to vector<1x16x48xf32>
      tpu.vector_store %arg6[%c1_29, %c0_30, %c0_31], %63 {strides = array<i32>} : memref<4x16x48xf32, #tpu.memory_space<vmem>>, vector<1x16x48xf32>,
      %64 = vector.extract_strided_slice %43 {offsets = [0, 2, 0], sizes = [16, 1, 16], strides = [1, 1, 1]} : vector<16x4x16xf32> to vector<16x1x16xf32>
      %65 = vector.shape_cast %64 : vector<16x1x16xf32> to vector<16x16xf32>
      %66 = vector.extract_strided_slice %43 {offsets = [0, 3, 0], sizes = [16, 1, 16], strides = [1, 1, 1]} : vector<16x4x16xf32> to vector<16x1x16xf32>
      %67 = vector.shape_cast %66 : vector<16x1x16xf32> to vector<16x16xf32>
      %68 = vector.extract_strided_slice %43 {offsets = [0, 0, 0], sizes = [16, 1, 16], strides = [1, 1, 1]} : vector<16x4x16xf32> to vector<16x1x16xf32>
      %69 = vector.shape_cast %68 : vector<16x1x16xf32> to vector<16x16xf32>
      %70 = tpu.concatenate %65, %67, %69 in 1 : vector<16x16xf32>, vector<16x16xf32>, vector<16x16xf32> -> vector<16x48xf32>
      %c2_32 = arith.constant 2 : index
      %c0_33 = arith.constant 0 : index
      %c0_34 = arith.constant 0 : index
      %71 = vector.load %arg6[%c2_32, %c0_33, %c0_34] : memref<4x16x48xf32, #tpu.memory_space<vmem>>, vector<1x16x48xf32>
      %72 = vector.shape_cast %71 : vector<1x16x48xf32> to vector<16x48xf32>
      %73 = vector.shape_cast %70 : vector<16x48xf32> to vector<1x16x48xf32>
      tpu.vector_store %arg6[%c2_32, %c0_33, %c0_34], %73 {strides = array<i32>} : memref<4x16x48xf32, #tpu.memory_space<vmem>>, vector<1x16x48xf32>,
      %74 = vector.extract_strided_slice %43 {offsets = [0, 3, 0], sizes = [16, 1, 16], strides = [1, 1, 1]} : vector<16x4x16xf32> to vector<16x1x16xf32>
      %75 = vector.shape_cast %74 : vector<16x1x16xf32> to vector<16x16xf32>
      %76 = vector.extract_strided_slice %43 {offsets = [0, 0, 0], sizes = [16, 1, 16], strides = [1, 1, 1]} : vector<16x4x16xf32> to vector<16x1x16xf32>
      %77 = vector.shape_cast %76 : vector<16x1x16xf32> to vector<16x16xf32>
      %78 = vector.extract_strided_slice %43 {offsets = [0, 1, 0], sizes = [16, 1, 16], strides = [1, 1, 1]} : vector<16x4x16xf32> to vector<16x1x16xf32>
      %79 = vector.shape_cast %78 : vector<16x1x16xf32> to vector<16x16xf32>
      %80 = tpu.concatenate %75, %77, %79 in 1 : vector<16x16xf32>, vector<16x16xf32>, vector<16x16xf32> -> vector<16x48xf32>
      %c3_35 = arith.constant 3 : index
      %c0_36 = arith.constant 0 : index
      %c0_37 = arith.constant 0 : index
      %81 = vector.load %arg6[%c3_35, %c0_36, %c0_37] : memref<4x16x48xf32, #tpu.memory_space<vmem>>, vector<1x16x48xf32>
      %82 = vector.shape_cast %81 : vector<1x16x48xf32> to vector<16x48xf32>
      %83 = vector.shape_cast %80 : vector<16x48xf32> to vector<1x16x48xf32>
      tpu.vector_store %arg6[%c3_35, %c0_36, %c0_37], %83 {strides = array<i32>} : memref<4x16x48xf32, #tpu.memory_space<vmem>>, vector<1x16x48xf32>,
    } else {
    }
    %c0 = arith.constant 0 : index
    %c0_1 = arith.constant 0 : index
    %3 = vector.load %arg3[%c0, %c0_1] : memref<48x32xf32, #tpu.memory_space<vmem>>, vector<48x32xf32>
    %c0_2 = arith.constant 0 : index
    %c0_3 = arith.constant 0 : index
    %4 = vector.load %arg4[%c0_2, %c0_3] : memref<1x32xf32, #tpu.memory_space<vmem>>, vector<1x32xf32>
    %c0_4 = arith.constant 0 : index
    %c0_5 = arith.constant 0 : index
    %c0_6 = arith.constant 0 : index
    %5 = vector.load %arg6[%c0_4, %c0_5, %c0_6] : memref<4x16x48xf32, #tpu.memory_space<vmem>>, vector<1x16x48xf32>
    %6 = vector.shape_cast %5 : vector<1x16x48xf32> to vector<16x48xf32>
    %cst = arith.constant dense<0.000000e+00> : vector<16x32xf32>
    %7 = tpu.matmul %6, %3, %cst {dimension_numbers = #tpu.dot_dimension_numbers<[1], [0], [0], [1], [0, 0, 1, 1], [], []>} : vector<16x48xf32>, vector<48x32xf32>, vector<16x32xf32> -> vector<16x32xf32>
    %8 = vector.broadcast %4 : vector<1x32xf32> to vector<16x32xf32>
    %9 = arith.addf %7, %8 : vector<16x32xf32>
    %cst_7 = arith.constant 1.000000e-01 : f32
    %10 = vector.broadcast %cst_7 : f32 to vector<16x32xf32>
    %11 = arith.mulf %10, %9 : vector<16x32xf32>
    %12 = arith.maximumf %9, %11 : vector<16x32xf32>
    %c1 = arith.constant 1 : index
    %c0_8 = arith.constant 0 : index
    %c0_9 = arith.constant 0 : index
    %13 = vector.load %arg6[%c1, %c0_8, %c0_9] : memref<4x16x48xf32, #tpu.memory_space<vmem>>, vector<1x16x48xf32>
    %14 = vector.shape_cast %13 : vector<1x16x48xf32> to vector<16x48xf32>
    %cst_10 = arith.constant dense<0.000000e+00> : vector<16x32xf32>
    %15 = tpu.matmul %14, %3, %cst_10 {dimension_numbers = #tpu.dot_dimension_numbers<[1], [0], [0], [1], [0, 0, 1, 1], [], []>} : vector<16x48xf32>, vector<48x32xf32>, vector<16x32xf32> -> vector<16x32xf32>
    %16 = vector.broadcast %4 : vector<1x32xf32> to vector<16x32xf32>
    %17 = arith.addf %15, %16 : vector<16x32xf32>
    %cst_11 = arith.constant 1.000000e-01 : f32
    %18 = vector.broadcast %cst_11 : f32 to vector<16x32xf32>
    %19 = arith.mulf %18, %17 : vector<16x32xf32>
    %20 = arith.maximumf %17, %19 : vector<16x32xf32>
    %c2 = arith.constant 2 : index
    %c0_12 = arith.constant 0 : index
    %c0_13 = arith.constant 0 : index
    %21 = vector.load %arg6[%c2, %c0_12, %c0_13] : memref<4x16x48xf32, #tpu.memory_space<vmem>>, vector<1x16x48xf32>
    %22 = vector.shape_cast %21 : vector<1x16x48xf32> to vector<16x48xf32>
    %cst_14 = arith.constant dense<0.000000e+00> : vector<16x32xf32>
    %23 = tpu.matmul %22, %3, %cst_14 {dimension_numbers = #tpu.dot_dimension_numbers<[1], [0], [0], [1], [0, 0, 1, 1], [], []>} : vector<16x48xf32>, vector<48x32xf32>, vector<16x32xf32> -> vector<16x32xf32>
    %24 = vector.broadcast %4 : vector<1x32xf32> to vector<16x32xf32>
    %25 = arith.addf %23, %24 : vector<16x32xf32>
    %cst_15 = arith.constant 1.000000e-01 : f32
    %26 = vector.broadcast %cst_15 : f32 to vector<16x32xf32>
    %27 = arith.mulf %26, %25 : vector<16x32xf32>
    %28 = arith.maximumf %25, %27 : vector<16x32xf32>
    %c3 = arith.constant 3 : index
    %c0_16 = arith.constant 0 : index
    %c0_17 = arith.constant 0 : index
    %29 = vector.load %arg6[%c3, %c0_16, %c0_17] : memref<4x16x48xf32, #tpu.memory_space<vmem>>, vector<1x16x48xf32>
    %30 = vector.shape_cast %29 : vector<1x16x48xf32> to vector<16x48xf32>
    %cst_18 = arith.constant dense<0.000000e+00> : vector<16x32xf32>
    %31 = tpu.matmul %30, %3, %cst_18 {dimension_numbers = #tpu.dot_dimension_numbers<[1], [0], [0], [1], [0, 0, 1, 1], [], []>} : vector<16x48xf32>, vector<48x32xf32>, vector<16x32xf32> -> vector<16x32xf32>
    %32 = vector.broadcast %4 : vector<1x32xf32> to vector<16x32xf32>
    %33 = arith.addf %31, %32 : vector<16x32xf32>
    %cst_19 = arith.constant 1.000000e-01 : f32
    %34 = vector.broadcast %cst_19 : f32 to vector<16x32xf32>
    %35 = arith.mulf %34, %33 : vector<16x32xf32>
    %36 = arith.maximumf %33, %35 : vector<16x32xf32>
    %37 = vector.shape_cast %12 : vector<16x32xf32> to vector<16x1x32xf32>
    %38 = vector.shape_cast %20 : vector<16x32xf32> to vector<16x1x32xf32>
    %39 = vector.shape_cast %28 : vector<16x32xf32> to vector<16x1x32xf32>
    %40 = vector.shape_cast %36 : vector<16x32xf32> to vector<16x1x32xf32>
    %41 = tpu.concatenate %37, %38, %39, %40 in 1 : vector<16x1x32xf32>, vector<16x1x32xf32>, vector<16x1x32xf32>, vector<16x1x32xf32> -> vector<16x4x32xf32>
    %c0_20 = arith.constant 0 : index
    %c0_21 = arith.constant 0 : index
    %c0_22 = arith.constant 0 : index
    %42 = vector.load %arg5[%c0_20, %c0_21, %c0_22] : memref<16x4x32xf32, #tpu.memory_space<vmem>>, vector<16x4x32xf32>
    tpu.vector_store %arg5[%c0_20, %c0_21, %c0_22], %41 {strides = array<i32>} : memref<16x4x32xf32, #tpu.memory_space<vmem>>, vector<16x4x32xf32>,
    return
  }
  func.func @transform_0(%arg0: i32, %arg1: i32) -> (i32, i32, i32) {
    %c0_i32 = arith.constant 0 : i32
    %c0_i32_0 = arith.constant 0 : i32
    %c0_i32_1 = arith.constant 0 : i32
    return %arg0, %c0_i32, %c0_i32_0 : i32, i32, i32
  }
  func.func @transform_1(%arg0: i32, %arg1: i32) -> (i32, i32) {
    %c0_i32 = arith.constant 0 : i32
    %c0_i32_0 = arith.constant 0 : i32
    return %c0_i32, %arg1 : i32, i32
  }
  func.func @transform_2(%arg0: i32, %arg1: i32) -> (i32, i32) {
    %c0_i32 = arith.constant 0 : i32
    %c0_i32_0 = arith.constant 0 : i32
    return %c0_i32, %arg1 : i32, i32
  }
  func.func @transform_3(%arg0: i32, %arg1: i32) -> (i32, i32, i32) {
    %c0_i32 = arith.constant 0 : i32
    %c0_i32_0 = arith.constant 0 : i32
    return %arg0, %c0_i32, %arg1 : i32, i32, i32
  }
}

</mosaic_0001>

<llo_original>
// kernel: tpu_custom_call.1
$region0: #{tpu_custom_call.1}
  #allocation0 [shape = 'u32[]', space=smem, size = 0x4, offset = 0x4, fixed_abs, tag = 'smem constant byte address 0x4 - core index']
  #allocation1 [shape = 'u32[144,128]{1,0:T(1,128)}', space=vmem, size = 0x12000, scoped, tag = 'internal scratch']
  #allocation2 [shape = 'f32[4,16,48]{2,1,0:T(8,128)}', space=vmem, size = 0x8000, scoped, tag = 'scratch operand']
  %s0 = inlined_call_operand.vmem [shape: f32[32,4,16], index: 0, kind: input, shape index: {}]
  %s1 = inlined_call_operand.vmem [shape: f32[48,32], index: 1, kind: input, shape index: {}]
  %s2 = inlined_call_operand.vmem [shape: f32[1,32], index: 2, kind: input, shape index: {}]
  %s3 = inlined_call_operand.hbm [shape: f32[32,4,32], index: 3, kind: output, shape index: {}]
  %s4 = sld [smem:[#allocation0]]
  $region49: #{tpu_custom_call.1} parent=0
    _
  %s6 = ssub.s32 1, %s4
  %s7 = scalar_select 0, %s6, %s4
  $region1: #{tpu_custom_call.1} parent=0
    #allocation3 [shape = 'u8[65536]{0}', space=vmem, size = 0x10000, scoped, tag = 'output window, operand 0']
    #allocation4 [shape = 's32[2]{0}', space=sflag, size = 0x8, scoped, tag = 'scoped memory for tpu_custom_call.1']
    %8 = vsyncpa [#allocation4], 0
    %s9 = scalar_lea.sflag [#allocation4], 1
    %10 = vsyncpa %s9, 0
    loop: start=0, step=1, limit=4
    $region2: #{tpu_custom_call.1} parent=1 // loop_pre_header
      _
    $region3: #{tpu_custom_call.1} parent=1 // loop_header
      %s12 = sphi 0, %s16
      %p13 = scmp.ge.s32.totalorder %s12, 4
      %s19 = sphi 0, %s31
      %s20 = sphi 0, %s27
      %s21 = sphi 0, %s19
      %s22 = sphi 0, %s20
      %s23 = sphi 0, %s21
      %s24 = sphi 0, %s22
      %s34 = sphi 0, %s36
      %s37 = sphi 0, %s34
      %s38 = sphi 0, %s37
      %s54 = sphi 0, %s38
      %s60 = sphi 0, %s62
      %s63 = sphi 0, %s60
      %s64 = sphi 0, %s63
      %s80 = sphi 0, %s64
      %s86 = sphi 0, %s88
      %s89 = sphi 0, %s86
      %s90 = sphi 0, %s89
      %s106 = sphi 0, %s90
      %s114 = sphi 0, %s116
      %s117 = sphi 0, %s114
      %s118 = sphi 0, %s117
      %s134 = sphi 0, %s118
    $region4: #{tpu_custom_call.1} parent=1 // loop_header_branch
      %15 = sbr.rel (%p13) target = $region8
    $region5: #{tpu_custom_call.1} parent=1 // loop_body
      %s17 = ssub.s32 %s12, 1
      %s18 = ssub.s32 %s12, 2
      %s25 = sadd.s32 1, %s20
      %p26 = scmp.ge.s32.totalorder %s25, 1
      %s27 = scalar_select %p26, 0, %s25
      %s28 = sadd.s32 1, %s19
      %s29 = scalar_select %p26, %s28, %s19
      %p30 = scmp.ge.s32.totalorder %s29, 2
      %s31 = scalar_select %p30, 0, %s29
      %s32 = ssub.s32 %s19, %s31
      %p33 = scmp.eq.s32.totalorder %s32, 0
      %s35 = sadd.s32 %s34, 1
      %s36 = scalar_select %p33, %s34, %s35
      %p39 = pneg %p33
      %p40 = scmp.eq.s32.totalorder %s12, 1
      %p41 = por %p39, %p40
      %p42 = scmp.ne.s32.totalorder %s34, %s37
      %p43 = scmp.eq.s32.totalorder %s12, 0
      %p44 = por %p42, %p43
      %p45 = scmp.ne.s32.totalorder %s34, %s37
      %p46 = scmp.eq.s32.totalorder %s17, 1
      %p47 = por %p45, %p46
      %p48 = scmp.ne.s32.totalorder %s37, %s38
      %p49 = scmp.eq.s32.totalorder %s17, 0
      %p50 = por %p48, %p49
      %p51 = scmp.ne.s32.totalorder %s37, %s38
      %p52 = scmp.eq.s32.totalorder %s18, 1
      %p53 = por %p51, %p52
      %p55 = scmp.ne.s32.totalorder %s38, %s54
      %p56 = scmp.eq.s32.totalorder %s18, 0
      %p57 = por %p55, %p56
      %s58 = ssub.s32 %s20, %s27
      %p59 = scmp.eq.s32.totalorder %s58, 0
      %s61 = sadd.s32 %s60, 1
      %s62 = scalar_select %p59, %s60, %s61
      %p65 = pneg %p59
      %p66 = scmp.eq.s32.totalorder %s12, 1
      %p67 = por %p65, %p66
      %p68 = scmp.ne.s32.totalorder %s60, %s63
      %p69 = scmp.eq.s32.totalorder %s12, 0
      %p70 = por %p68, %p69
      %p71 = scmp.ne.s32.totalorder %s60, %s63
      %p72 = scmp.eq.s32.totalorder %s17, 1
      %p73 = por %p71, %p72
      %p74 = scmp.ne.s32.totalorder %s63, %s64
      %p75 = scmp.eq.s32.totalorder %s17, 0
      %p76 = por %p74, %p75
      %p77 = scmp.ne.s32.totalorder %s63, %s64
      %p78 = scmp.eq.s32.totalorder %s18, 1
      %p79 = por %p77, %p78
      %p81 = scmp.ne.s32.totalorder %s64, %s80
      %p82 = scmp.eq.s32.totalorder %s18, 0
      %p83 = por %p81, %p82
      %s84 = ssub.s32 %s20, %s27
      %p85 = scmp.eq.s32.totalorder %s84, 0
      %s87 = sadd.s32 %s86, 1
      %s88 = scalar_select %p85, %s86, %s87
      %p91 = pneg %p85
      %p92 = scmp.eq.s32.totalorder %s12, 1
      %p93 = por %p91, %p92
      %p94 = scmp.ne.s32.totalorder %s86, %s89
      %p95 = scmp.eq.s32.totalorder %s12, 0
      %p96 = por %p94, %p95
      %p97 = scmp.ne.s32.totalorder %s86, %s89
      %p98 = scmp.eq.s32.totalorder %s17, 1
      %p99 = por %p97, %p98
      %p100 = scmp.ne.s32.totalorder %s89, %s90
      %p101 = scmp.eq.s32.totalorder %s17, 0
      %p102 = por %p100, %p101
      %p103 = scmp.ne.s32.totalorder %s89, %s90
      %p104 = scmp.eq.s32.totalorder %s18, 1
      %p105 = por %p103, %p104
      %p107 = scmp.ne.s32.totalorder %s90, %s106
      %p108 = scmp.eq.s32.totalorder %s18, 0
      %p109 = por %p107, %p108
      %s110 = ssub.s32 %s19, %s31
      %s111 = ssub.s32 %s20, %s27
      %s112 = sor.u32 %s110, %s111
      %p113 = scmp.eq.s32.totalorder %s112, 0
      %s115 = sadd.s32 %s114, 1
      %s116 = scalar_select %p113, %s114, %s115
      %p119 = pneg %p113
      %p120 = scmp.eq.s32.totalorder %s12, 1
      %p121 = por %p119, %p120
      %p122 = scmp.ne.s32.totalorder %s114, %s117
      %p123 = scmp.eq.s32.totalorder %s12, 0
      %p124 = por %p122, %p123
      %p125 = scmp.ne.s32.totalorder %s114, %s117
      %p126 = scmp.eq.s32.totalorder %s17, 1
      %p127 = por %p125, %p126
      %p128 = scmp.ne.s32.totalorder %s117, %s118
      %p129 = scmp.eq.s32.totalorder %s17, 0
      %p130 = por %p128, %p129
      %p131 = scmp.ne.s32.totalorder %s117, %s118
      %p132 = scmp.eq.s32.totalorder %s18, 1
      %p133 = por %p131, %p132
      %p135 = scmp.ne.s32.totalorder %s118, %s134
      %p136 = scmp.eq.s32.totalorder %s18, 0
      %p137 = por %p135, %p136
      %p138 = scmp.le.s32.totalorder 1, %s12
      %p139 = scmp.lt.s32.totalorder %s12, 3
      %p140 = pnand %p138, %p139
      %p141 = pneg %p140
      // Predicated region
      $region9: #{tpu_custom_call.1} parent=5 // pred_check
        _
      $region10: #{tpu_custom_call.1} parent=5 // pred_check_branch
        %143 = sbr.rel (%p140) target = $region12
      $region11: #{tpu_custom_call.1} parent=5 // pred_region
        %s144 = ssub.s32 %s12, 1
        // Predicated region
        $region13: #{tpu_custom_call.1} parent=11 // pred_check
          %p145 = pneg %p76
        $region14: #{tpu_custom_call.1} parent=11 // pred_check_branch
          %147 = sbr.rel (%p145) target = $region16
        $region15: #{tpu_custom_call.1} parent=11 // pred_region
          %p148 = scmp.lt.s32.totalorder %s22, 0
          %s149 = scalar_select %p148, %s22, 0
          %s150 = smul.addr %s149, 8
          %s151 = scalar_lea.vmem %s1, %s150
        $region16: #{tpu_custom_call.1} parent=11 // pred_fallthru
          _
        // Predicated region
        $region17: #{tpu_custom_call.1} parent=11 // pred_check
          %p152 = pneg %p102
        $region18: #{tpu_custom_call.1} parent=11 // pred_check_branch
          %154 = sbr.rel (%p152) target = $region20
        $region19: #{tpu_custom_call.1} parent=11 // pred_region
          %p155 = scmp.lt.s32.totalorder %s22, 0
          %s156 = scalar_select %p155, %s22, 0
          %s157 = scalar_lea.vmem %s2, %s156
        $region20: #{tpu_custom_call.1} parent=11 // pred_fallthru
          _
      $region12: #{tpu_custom_call.1} parent=5 // pred_fallthru
        _
      %p158 = scmp.lt.s32.totalorder %s12, 2
      // Predicated region
      $region21: #{tpu_custom_call.1} parent=5 // pred_check
        %p159 = pneg %p158
      $region22: #{tpu_custom_call.1} parent=5 // pred_check_branch
        %161 = sbr.rel (%p159) target = $region24
      $region23: #{tpu_custom_call.1} parent=5 // pred_region
        // Predicated region
        $region25: #{tpu_custom_call.1} parent=23 // pred_check
          %p162 = pneg %p44
        $region26: #{tpu_custom_call.1} parent=23 // pred_check_branch
          %164 = sbr.rel (%p162) target = $region28
        $region27: #{tpu_custom_call.1} parent=23 // pred_region
          %s165 = smul.u32 16, %s19
          %p166 = scmp.lt.s32.totalorder %s165, 31
          %s167 = scalar_select %p166, %s165, 31
          %s168 = smul.addr %s167, 4
          %s169 = scalar_lea.vmem %s0, %s168
          %s170 = smul.u32 16, %s19
        $region28: #{tpu_custom_call.1} parent=23 // pred_fallthru
          _
      $region24: #{tpu_custom_call.1} parent=5 // pred_fallthru
        _
      %p171 = scmp.le.s32.totalorder 1, %s12
      %p172 = scmp.lt.s32.totalorder %s12, 3
      %p173 = pnand %p171, %p172
      %p174 = pneg %p173
      // Predicated region
      $region29: #{tpu_custom_call.1} parent=5 // pred_check
        _
      $region30: #{tpu_custom_call.1} parent=5 // pred_check_branch
        %176 = sbr.rel (%p173) target = $region32
      $region31: #{tpu_custom_call.1} parent=5 // pred_region
        %s177 = ssub.s32 %s12, 1
        %s178 = smul.u32 16, %s21
        %p179 = scmp.lt.s32.totalorder %s178, 31
        %s180 = scalar_select %p179, %s178, 31
        %s181 = smul.addr %s180, 4
        %s182 = scalar_lea.vmem %s0, %s181
        %p183 = pneg %p50
        %p184 = pneg %p47
        %p185 = scmp.lt.s32.totalorder %s22, 0
        %s186 = scalar_select %p185, %s22, 0
        %s187 = smul.addr %s186, 8
        %s188 = scalar_lea.vmem %s1, %s187
        %p189 = pneg %p76
        %p190 = pneg %p73
        %p191 = scmp.lt.s32.totalorder %s22, 0
        %s192 = scalar_select %p191, %s22, 0
        %s193 = scalar_lea.vmem %s2, %s192
        %p194 = pneg %p102
        %p195 = pneg %p99
        %p196 = pneg %p130
        %p197 = pneg %p127
        %s198 = sand.u32 %s117, 1
        %s199 = scalar_lea.sflag [#allocation4], %s198
        %s200 = sand.u32 %s117, 1
        %s201 = smul.addr %s200, 64
        %s202 = scalar_lea.vmem [#allocation3], %s201
        %s203 = smul.u32 16, %s21
        %p204 = scmp.lt.s32.totalorder %s203, 31
        %s205 = scalar_select %p204, %s203, 31
        %s206 = smul.addr %s205, 4
        %s207 = scalar_lea.vmem %s0, %s206
        %s208 = smul.u32 16, %s21
        %p209 = scmp.lt.s32.totalorder %s22, 0
        %s210 = scalar_select %p209, %s22, 0
        %s211 = smul.addr %s210, 8
        %s212 = scalar_lea.vmem %s1, %s211
        %p213 = scmp.lt.s32.totalorder %s22, 0
        %s214 = scalar_select %p213, %s22, 0
        %s215 = scalar_lea.vmem %s2, %s214
        %s216 = smul.u32 16, %s21
        %p217 = scmp.eq.s32.totalorder %s22, 0
        // Predicated region
        $region33: #{tpu_custom_call.1} parent=31 // pred_check
          %p218 = pneg %p217
        $region34: #{tpu_custom_call.1} parent=31 // pred_check_branch
          %220 = sbr.rel (%p218) target = $region36
        $region35: #{tpu_custom_call.1} parent=31 // pred_region
          %v221 = vld [vmem:[%s207] sm:$0xf]
          %v222 = vld [vmem:[%s207 + $0x4] sm:$0xf]
          %v223 = vld [vmem:[%s207 + $0x8] sm:$0xf]
          %v224 = vld [vmem:[%s207 + $0xc] sm:$0xf]
          %v225 = vld [vmem:[%s207 + $0x10] sm:$0xf]
          %v226 = vld [vmem:[%s207 + $0x14] sm:$0xf]
          %v227 = vld [vmem:[%s207 + $0x18] sm:$0xf]
          %v228 = vld [vmem:[%s207 + $0x1c] sm:$0xf]
          %v229 = vld [vmem:[%s207 + $0x20] sm:$0xf]
          %v230 = vld [vmem:[%s207 + $0x24] sm:$0xf]
          %v231 = vld [vmem:[%s207 + $0x28] sm:$0xf]
          %v232 = vld [vmem:[%s207 + $0x2c] sm:$0xf]
          %v233 = vld [vmem:[%s207 + $0x30] sm:$0xf]
          %v234 = vld [vmem:[%s207 + $0x34] sm:$0xf]
          %v235 = vld [vmem:[%s207 + $0x38] sm:$0xf]
          %v236 = vld [vmem:[%s207 + $0x3c] sm:$0xf]
          %v253 = vrot.slane %v222, 7
          %vm254 = vcmask 1041409
          %v255 = vsel %vm254, %v253, %v221
          %v256 = vrot.slane %v223, 6
          %vm257 = vcmask 1042434
          %v258 = vsel %vm257, %v256, %v255
          %v259 = vrot.slane %v224, 5
          %vm260 = vcmask 1043459
          %v261 = vsel %vm260, %v259, %v258
          %v262 = vrot.slane %v225, 4
          %vm263 = vcmask 1044484
          %v264 = vsel %vm263, %v262, %v261
          %v265 = vrot.slane %v226, 3
          %vm266 = vcmask 1045509
          %v267 = vsel %vm266, %v265, %v264
          %v268 = vrot.slane %v227, 2
          %vm269 = vcmask 1046534
          %v270 = vsel %vm269, %v268, %v267
          %v271 = vrot.slane %v228, 1
          %vm272 = vcmask 1047559
          %v273 = vsel %vm272, %v271, %v270
          %v274 = vrot.slane %v230, 7
          %v275 = vsel %vm254, %v274, %v229
          %v276 = vrot.slane %v231, 6
          %v277 = vsel %vm257, %v276, %v275
          %v278 = vrot.slane %v232, 5
          %v279 = vsel %vm260, %v278, %v277
          %v280 = vrot.slane %v233, 4
          %v281 = vsel %vm263, %v280, %v279
          %v282 = vrot.slane %v234, 3
          %v283 = vsel %vm266, %v282, %v281
          %v284 = vrot.slane %v235, 2
          %v285 = vsel %vm269, %v284, %v283
          %v286 = vrot.slane %v236, 1
          %v287 = vsel %vm272, %v286, %v285
          %v290 = vrot.slane %v221, 1
          %v291 = vsel %vm254, %v222, %v290
          %v292 = vrot.slane %v223, 7
          %v293 = vsel %vm257, %v292, %v291
          %v294 = vrot.slane %v224, 6
          %v295 = vsel %vm260, %v294, %v293
          %v296 = vrot.slane %v225, 5
          %v297 = vsel %vm263, %v296, %v295
          %v298 = vrot.slane %v226, 4
          %v299 = vsel %vm266, %v298, %v297
          %v300 = vrot.slane %v227, 3
          %v301 = vsel %vm269, %v300, %v299
          %v302 = vrot.slane %v228, 2
          %v303 = vsel %vm272, %v302, %v301
          %v304 = vrot.slane %v229, 1
          %v305 = vsel %vm254, %v230, %v304
          %v306 = vrot.slane %v231, 7
          %v307 = vsel %vm257, %v306, %v305
          %v308 = vrot.slane %v232, 6
          %v309 = vsel %vm260, %v308, %v307
          %v310 = vrot.slane %v233, 5
          %v311 = vsel %vm263, %v310, %v309
          %v312 = vrot.slane %v234, 4
          %v313 = vsel %vm266, %v312, %v311
          %v314 = vrot.slane %v235, 3
          %v315 = vsel %vm269, %v314, %v313
          %v316 = vrot.slane %v236, 2
          %v317 = vsel %vm272, %v316, %v315
          %318 = vrot.lane.b32.xlu0 %v303, 16
          %v319 = vpop.permute.xlu0 %318
          %320 = vrot.lane.b32.xlu0 %v317, 16
          %v321 = vpop.permute.xlu0 %320
          %v324 = vrot.slane %v221, 2
          %v325 = vrot.slane %v222, 1
          %v326 = vsel %vm254, %v325, %v324
          %v327 = vsel %vm257, %v223, %v326
          %v328 = vrot.slane %v224, 7
          %v329 = vsel %vm260, %v328, %v327
          %v330 = vrot.slane %v225, 6
          %v331 = vsel %vm263, %v330, %v329
          %v332 = vrot.slane %v226, 5
          %v333 = vsel %vm266, %v332, %v331
          %v334 = vrot.slane %v227, 4
          %v335 = vsel %vm269, %v334, %v333
          %v336 = vrot.slane %v228, 3
          %v337 = vsel %vm272, %v336, %v335
          %v338 = vrot.slane %v229, 2
          %v339 = vrot.slane %v230, 1
          %v340 = vsel %vm254, %v339, %v338
          %v341 = vsel %vm257, %v231, %v340
          %v342 = vrot.slane %v232, 7
          %v343 = vsel %vm260, %v342, %v341
          %v344 = vrot.slane %v233, 6
          %v345 = vsel %vm263, %v344, %v343
          %v346 = vrot.slane %v234, 5
          %v347 = vsel %vm266, %v346, %v345
          %v348 = vrot.slane %v235, 4
          %v349 = vsel %vm269, %v348, %v347
          %v350 = vrot.slane %v236, 3
          %v351 = vsel %vm272, %v350, %v349
          %352 = vrot.lane.b32.xlu0 %v337, 32
          %v353 = vpop.permute.xlu0 %352
          %354 = vrot.lane.b32.xlu0 %v351, 32
          %v355 = vpop.permute.xlu0 %354
          %vm358 = vcmask 130048
          %v359 = vsel %vm358, %v273, %v319
          %v360 = vsel %vm358, %v287, %v321
          %vm361 = vcmask 261120
          %v362 = vsel %vm361, %v359, %v353
          %v363 = vsel %vm361, %v360, %v355
          %vm364 = vcmask 392192
          %365 = vst.msk [vmem:[#allocation2] sm:$0xff] %vm364, %v362
          %366 = vst.msk [vmem:[#allocation2 + $0x8] sm:$0xff] %vm364, %v363
          %v367 = vsel %vm257, %v253, %v221
          %v368 = vsel %vm260, %v256, %v367
          %v369 = vsel %vm263, %v259, %v368
          %v370 = vsel %vm266, %v262, %v369
          %v371 = vsel %vm269, %v265, %v370
          %v372 = vsel %vm272, %v268, %v371
          %v373 = vsel %vm254, %v229, %v271
          %v374 = vsel %vm257, %v274, %v373
          %v375 = vsel %vm260, %v276, %v374
          %v376 = vsel %vm263, %v278, %v375
          %v377 = vsel %vm266, %v280, %v376
          %v378 = vsel %vm269, %v282, %v377
          %v379 = vsel %vm272, %v284, %v378
          %v383 = vsel %vm257, %v222, %v290
          %v384 = vsel %vm260, %v292, %v383
          %v385 = vsel %vm263, %v294, %v384
          %v386 = vsel %vm266, %v296, %v385
          %v387 = vsel %vm269, %v298, %v386
          %v388 = vsel %vm272, %v300, %v387
          %v389 = vsel %vm254, %v304, %v302
          %v390 = vsel %vm257, %v230, %v389
          %v391 = vsel %vm260, %v306, %v390
          %v392 = vsel %vm263, %v308, %v391
          %v393 = vsel %vm266, %v310, %v392
          %v394 = vsel %vm269, %v312, %v393
          %v395 = vsel %vm272, %v314, %v394
          %396 = vrot.lane.b32.xlu0 %v388, 16
          %v397 = vpop.permute.xlu0 %396
          %398 = vrot.lane.b32.xlu0 %v395, 16
          %v399 = vpop.permute.xlu0 %398
          %400 = vrot.lane.b32.xlu0 %v316, 16
          %v401 = vpop.permute.xlu0 %400
          %v405 = vsel %vm257, %v325, %v324
          %v406 = vsel %vm260, %v223, %v405
          %v407 = vsel %vm263, %v328, %v406
          %v408 = vsel %vm266, %v330, %v407
          %v409 = vsel %vm269, %v332, %v408
          %v410 = vsel %vm272, %v334, %v409
          %v411 = vsel %vm254, %v338, %v336
          %v412 = vsel %vm257, %v339, %v411
          %v413 = vsel %vm260, %v231, %v412
          %v414 = vsel %vm263, %v342, %v413
          %v415 = vsel %vm266, %v344, %v414
          %v416 = vsel %vm269, %v346, %v415
          %v417 = vsel %vm272, %v348, %v416
          %418 = vrot.lane.b32.xlu0 %v410, 32
          %v419 = vpop.permute.xlu0 %418
          %420 = vrot.lane.b32.xlu0 %v417, 32
          %v421 = vpop.permute.xlu0 %420
          %422 = vrot.lane.b32.xlu0 %v350, 32
          %v423 = vpop.permute.xlu0 %422
          %v427 = vsel %vm358, %v372, %v397
          %v428 = vsel %vm358, %v379, %v399
          %v429 = vsel %vm358, %v286, %v401
          %v430 = vsel %vm361, %v427, %v419
          %v431 = vsel %vm361, %v428, %v421
          %v432 = vsel %vm361, %v429, %v423
          %s433 = scalar_lea.vmem [#allocation2], 16
          %vm434 = vcmask 392193
          %435 = vst.msk [vmem:[%s433 - $0x1] sm:$0xfe] %vm434, %v430
          %436 = vst.msk [vmem:[%s433 + $0x7] sm:$0xff] %vm364, %v431
          %vm437 = vcmask 385024
          %438 = vst.msk [vmem:[%s433 + $0xf] sm:$0x1] %vm437, %v432
          %v439 = vsel %vm260, %v253, %v221
          %v440 = vsel %vm263, %v256, %v439
          %v441 = vsel %vm266, %v259, %v440
          %v442 = vsel %vm269, %v262, %v441
          %v443 = vsel %vm272, %v265, %v442
          %v444 = vsel %vm254, %v271, %v268
          %v445 = vsel %vm257, %v229, %v444
          %v446 = vsel %vm260, %v274, %v445
          %v447 = vsel %vm263, %v276, %v446
          %v448 = vsel %vm266, %v278, %v447
          %v449 = vsel %vm269, %v280, %v448
          %v450 = vsel %vm272, %v282, %v449
          %v451 = vsel %vm254, %v286, %v284
          %v455 = vsel %vm260, %v222, %v290
          %v456 = vsel %vm263, %v292, %v455
          %v457 = vsel %vm266, %v294, %v456
          %v458 = vsel %vm269, %v296, %v457
          %v459 = vsel %vm272, %v298, %v458
          %v460 = vsel %vm254, %v302, %v300
          %v461 = vsel %vm257, %v304, %v460
          %v462 = vsel %vm260, %v230, %v461
          %v463 = vsel %vm263, %v306, %v462
          %v464 = vsel %vm266, %v308, %v463
          %v465 = vsel %vm269, %v310, %v464
          %v466 = vsel %vm272, %v312, %v465
          %v467 = vsel %vm254, %v316, %v314
          %468 = vrot.lane.b32.xlu0 %v459, 16
          %v469 = vpop.permute.xlu0 %468
          %470 = vrot.lane.b32.xlu0 %v466, 16
          %v471 = vpop.permute.xlu0 %470
          %472 = vrot.lane.b32.xlu0 %v467, 16
          %v473 = vpop.permute.xlu0 %472
          %v477 = vrot.slane %v221, 6
          %v478 = vrot.slane %v222, 5
          %v479 = vsel %vm260, %v478, %v477
          %v480 = vrot.slane %v223, 4
          %v481 = vsel %vm263, %v480, %v479
          %v482 = vrot.slane %v224, 3
          %v483 = vsel %vm266, %v482, %v481
          %v484 = vrot.slane %v225, 2
          %v485 = vsel %vm269, %v484, %v483
          %v486 = vrot.slane %v226, 1
          %v487 = vsel %vm272, %v486, %v485
          %v488 = vrot.slane %v228, 7
          %v489 = vsel %vm254, %v488, %v227
          %v490 = vrot.slane %v229, 6
          %v491 = vsel %vm257, %v490, %v489
          %v492 = vrot.slane %v230, 5
          %v493 = vsel %vm260, %v492, %v491
          %v494 = vrot.slane %v231, 4
          %v495 = vsel %vm263, %v494, %v493
          %v496 = vrot.slane %v232, 3
          %v497 = vsel %vm266, %v496, %v495
          %v498 = vrot.slane %v233, 2
          %v499 = vsel %vm269, %v498, %v497
          %v500 = vrot.slane %v234, 1
          %v501 = vsel %vm272, %v500, %v499
          %v502 = vrot.slane %v236, 7
          %v503 = vsel %vm254, %v502, %v235
          %504 = vrot.lane.b32.xlu0 %v487, 32
          %v505 = vpop.permute.xlu0 %504
          %506 = vrot.lane.b32.xlu0 %v501, 32
          %v507 = vpop.permute.xlu0 %506
          %508 = vrot.lane.b32.xlu0 %v503, 32
          %v509 = vpop.permute.xlu0 %508
          %v513 = vsel %vm358, %v443, %v469
          %v514 = vsel %vm358, %v450, %v471
          %v515 = vsel %vm358, %v451, %v473
          %v516 = vsel %vm361, %v513, %v505
          %v517 = vsel %vm361, %v514, %v507
          %v518 = vsel %vm361, %v515, %v509
          %s519 = scalar_lea.vmem [#allocation2], 32
          %vm520 = vcmask 392194
          %521 = vst.msk [vmem:[%s519 - $0x2] sm:$0xfc] %vm520, %v516
          %522 = vst.msk [vmem:[%s519 + $0x6] sm:$0xff] %vm364, %v517
          %vm523 = vcmask 386048
          %524 = vst.msk [vmem:[%s519 + $0xe] sm:$0x3] %vm523, %v518
          %v525 = vsel %vm263, %v253, %v221
          %v526 = vsel %vm266, %v256, %v525
          %v527 = vsel %vm269, %v259, %v526
          %v528 = vsel %vm272, %v262, %v527
          %v529 = vsel %vm254, %v268, %v265
          %v530 = vsel %vm257, %v271, %v529
          %v531 = vsel %vm260, %v229, %v530
          %v532 = vsel %vm263, %v274, %v531
          %v533 = vsel %vm266, %v276, %v532
          %v534 = vsel %vm269, %v278, %v533
          %v535 = vsel %vm272, %v280, %v534
          %v536 = vsel %vm254, %v284, %v282
          %v537 = vsel %vm257, %v286, %v536
          %v541 = vrot.slane %v221, 5
          %v542 = vrot.slane %v222, 4
          %v543 = vsel %vm263, %v542, %v541
          %v544 = vrot.slane %v223, 3
          %v545 = vsel %vm266, %v544, %v543
          %v546 = vrot.slane %v224, 2
          %v547 = vsel %vm269, %v546, %v545
          %v548 = vrot.slane %v225, 1
          %v549 = vsel %vm272, %v548, %v547
          %v550 = vrot.slane %v227, 7
          %v551 = vsel %vm254, %v550, %v226
          %v552 = vrot.slane %v228, 6
          %v553 = vsel %vm257, %v552, %v551
          %v554 = vrot.slane %v229, 5
          %v555 = vsel %vm260, %v554, %v553
          %v556 = vrot.slane %v230, 4
          %v557 = vsel %vm263, %v556, %v555
          %v558 = vrot.slane %v231, 3
          %v559 = vsel %vm266, %v558, %v557
          %v560 = vrot.slane %v232, 2
          %v561 = vsel %vm269, %v560, %v559
          %v562 = vrot.slane %v233, 1
          %v563 = vsel %vm272, %v562, %v561
          %v564 = vrot.slane %v235, 7
          %v565 = vsel %vm254, %v564, %v234
          %v566 = vrot.slane %v236, 6
          %v567 = vsel %vm257, %v566, %v565
          %568 = vrot.lane.b32.xlu0 %v549, 16
          %v569 = vpop.permute.xlu0 %568
          %570 = vrot.lane.b32.xlu0 %v563, 16
          %v571 = vpop.permute.xlu0 %570
          %572 = vrot.lane.b32.xlu0 %v567, 16
          %v573 = vpop.permute.xlu0 %572
          %v577 = vsel %vm263, %v478, %v477
          %v578 = vsel %vm266, %v480, %v577
          %v579 = vsel %vm269, %v482, %v578
          %v580 = vsel %vm272, %v484, %v579
          %v581 = vsel %vm254, %v227, %v486
          %v582 = vsel %vm257, %v488, %v581
          %v583 = vsel %vm260, %v490, %v582
          %v584 = vsel %vm263, %v492, %v583
          %v585 = vsel %vm266, %v494, %v584
          %v586 = vsel %vm269, %v496, %v585
          %v587 = vsel %vm272, %v498, %v586
          %v588 = vsel %vm254, %v235, %v500
          %v589 = vsel %vm257, %v502, %v588
          %590 = vrot.lane.b32.xlu0 %v580, 32
          %v591 = vpop.permute.xlu0 %590
          %592 = vrot.lane.b32.xlu0 %v587, 32
          %v593 = vpop.permute.xlu0 %592
          %594 = vrot.lane.b32.xlu0 %v589, 32
          %v595 = vpop.permute.xlu0 %594
          %v599 = vsel %vm358, %v528, %v569
          %v600 = vsel %vm358, %v535, %v571
          %v601 = vsel %vm358, %v537, %v573
          %v602 = vsel %vm361, %v599, %v591
          %v603 = vsel %vm361, %v600, %v593
          %v604 = vsel %vm361, %v601, %v595
          %s605 = scalar_lea.vmem [#allocation2], 48
          %vm606 = vcmask 392195
          %607 = vst.msk [vmem:[%s605 - $0x3] sm:$0xf8] %vm606, %v602
          %608 = vst.msk [vmem:[%s605 + $0x5] sm:$0xff] %vm364, %v603
          %vm609 = vcmask 387072
          %610 = vst.msk [vmem:[%s605 + $0xd] sm:$0x7] %vm609, %v604
        $region36: #{tpu_custom_call.1} parent=31 // pred_fallthru
          _
        %v611 = vld [vmem:[%s212] sm:$0xff]
        %v612 = vld [vmem:[%s212 + $0x8] sm:$0xff]
        %v613 = vld [vmem:[%s212 + $0x10] sm:$0xff]
        %v614 = vld [vmem:[%s212 + $0x18] sm:$0xff]
        %v615 = vld [vmem:[%s212 + $0x20] sm:$0xff]
        %v616 = vld [vmem:[%s212 + $0x28] sm:$0xff]
        %v617 = vld [vmem:[%s215] sm:$0x1]
        %v618 = vld [vmem:[#allocation2] sm:$0xff]
        %v619 = vld [vmem:[#allocation2 + $0x8] sm:$0xff]
        %v621 = vlaneseq
        %v622 = vshrl.u32 %v621, 7
        %v623 = vsub.s32 0, %v622
        %v624 = vrot.slane %v617, %v623
        %vm626 = vcmask 392192
        %v628 = vsel %vm626, %v618, 0
        %v631 = vsel %vm626, %v619, 0
        %633 = vmatprep.subr.mxu0 0.0
        %634 = vmatpush1.msra.mxu0 0.0
        %635 = vmatprep.subr.mxu0 0.0
        %636 = vmatpush1.msra.mxu0 0.0
        %637 = vmatprep.subr.mxu0 0.0
        %638 = vmatpush1.msra.mxu0 0.0
        %639 = vmatprep.subr.mxu0 0.0
        %640 = vmatpush1.msra.mxu0 0.0
        %641 = vmatprep.subr.mxu0 0.0
        %642 = vmatpush1.msra.mxu0 0.0
        %643 = vmatprep.subr.mxu0 0.0
        %644 = vmatpush1.msra.mxu0 0.0
        %645 = vmatprep.subr.mxu0 0.0
        %646 = vmatpush1.msra.mxu0 0.0
        %647 = vmatprep.subr.mxu0 0.0
        %648 = vmatpush1.msra.mxu0 0.0
        %649 = vmatprep.subr.mxu0 0.0
        %650 = vmatpush1.msra.mxu0 0.0
        %651 = vmatprep.subr.mxu0 0.0
        %652 = vmatpush1.msra.mxu0 0.0
        %653 = vmatprep.subr.mxu0 0.0
        %654 = vmatpush1.msra.mxu0 %v616
        %655 = vmatprep.subr.mxu0 0.0
        %656 = vmatpush1.msra.mxu0 %v615
        %657 = vmatprep.subr.mxu0 0.0
        %658 = vmatpush1.msra.mxu0 %v614
        %659 = vmatprep.subr.mxu0 0.0
        %660 = vmatpush1.msra.mxu0 %v613
        %661 = vmatprep.subr.mxu0 0.0
        %662 = vmatpush1.msra.mxu0 %v612
        %663 = vmatprep.subr.mxu0 0.0
        %664 = vmatpush1.msra.mxu0 %v611
        %665 = vmatprep.subr.mxu0 0.0
        %666 = vmatpush2.msra.mxu0 0.0
        %667 = vmatprep.subr.mxu0 0.0
        %668 = vmatpush2.msra.mxu0 0.0
        %669 = vmatprep.subr.mxu0 0.0
        %670 = vmatpush2.msra.mxu0 0.0
        %671 = vmatprep.subr.mxu0 0.0
        %672 = vmatpush2.msra.mxu0 0.0
        %673 = vmatprep.subr.mxu0 0.0
        %674 = vmatpush2.msra.mxu0 0.0
        %675 = vmatprep.subr.mxu0 0.0
        %676 = vmatpush2.msra.mxu0 0.0
        %677 = vmatprep.subr.mxu0 0.0
        %678 = vmatpush2.msra.mxu0 0.0
        %679 = vmatprep.subr.mxu0 0.0
        %680 = vmatpush2.msra.mxu0 0.0
        %681 = vmatprep.subr.mxu0 0.0
        %682 = vmatpush2.msra.mxu0 0.0
        %683 = vmatprep.subr.mxu0 0.0
        %684 = vmatpush2.msra.mxu0 0.0
        %685 = vmatprep.subr.mxu0 0.0
        %686 = vmatpush2.msra.mxu0 0.0
        %687 = vmatprep.subr.mxu0 0.0
        %688 = vmatpush2.msra.mxu0 0.0
        %689 = vmatprep.subr.mxu0 0.0
        %690 = vmatpush2.msra.mxu0 0.0
        %691 = vmatprep.subr.mxu0 0.0
        %692 = vmatpush2.msra.mxu0 0.0
        %693 = vmatprep.subr.mxu0 0.0
        %694 = vmatpush2.msra.mxu0 0.0
        %695 = vmatprep.subr.mxu0 0.0
        %696 = vmatpush2.msra.mxu0 0.0
        %697 = vmatprep.mubr.f32.mxu0 0.0
        %698 = vmatmul.mubr.f32.gmra.mxu0 %v628
        %v699 = vpop.f32.mrf.mxu0
        %v700 = vadd.f32 %v624, %v699
        %v701 = vpop.f32.mrf.mxu0
        %702 = vmatprep.mubr.f32.mxu0 0.0
        %703 = vmatmul.mubr.f32.gmra.mxu0 %v631
        %v704 = vpop.f32.mrf.mxu0
        %v705 = vadd.f32 %v624, %v704
        %v706 = vpop.f32.mrf.mxu0
        %707 = vdwg.mxu0
        %v708 = vmul.f32 %v700, 0.1
        %v709 = vmul.f32 %v705, 0.1
        %v710 = vmax.f32 %v700, %v708
        %v711 = vmax.f32 %v705, %v709
        %s712 = scalar_lea.vmem [#allocation2], 16
        %v713 = vld [vmem:[%s712] sm:$0xff]
        %v714 = vld [vmem:[%s712 + $0x8] sm:$0xff]
        %v716 = vsel %vm626, %v713, 0
        %v719 = vsel %vm626, %v714, 0
        %721 = vmatprep.subr.mxu0 0.0
        %722 = vmatpush1.msra.mxu0 0.0
        %723 = vmatprep.subr.mxu0 0.0
        %724 = vmatpush1.msra.mxu0 0.0
        %725 = vmatprep.subr.mxu0 0.0
        %726 = vmatpush1.msra.mxu0 0.0
        %727 = vmatprep.subr.mxu0 0.0
        %728 = vmatpush1.msra.mxu0 0.0
        %729 = vmatprep.subr.mxu0 0.0
        %730 = vmatpush1.msra.mxu0 0.0
        %731 = vmatprep.subr.mxu0 0.0
        %732 = vmatpush1.msra.mxu0 0.0
        %733 = vmatprep.subr.mxu0 0.0
        %734 = vmatpush1.msra.mxu0 0.0
        %735 = vmatprep.subr.mxu0 0.0
        %736 = vmatpush1.msra.mxu0 0.0
        %737 = vmatprep.subr.mxu0 0.0
        %738 = vmatpush1.msra.mxu0 0.0
        %739 = vmatprep.subr.mxu0 0.0
        %740 = vmatpush1.msra.mxu0 0.0
        %741 = vmatprep.subr.mxu0 0.0
        %742 = vmatpush1.msra.mxu0 %v616
        %743 = vmatprep.subr.mxu0 0.0
        %744 = vmatpush1.msra.mxu0 %v615
        %745 = vmatprep.subr.mxu0 0.0
        %746 = vmatpush1.msra.mxu0 %v614
        %747 = vmatprep.subr.mxu0 0.0
        %748 = vmatpush1.msra.mxu0 %v613
        %749 = vmatprep.subr.mxu0 0.0
        %750 = vmatpush1.msra.mxu0 %v612
        %751 = vmatprep.subr.mxu0 0.0
        %752 = vmatpush1.msra.mxu0 %v611
        %753 = vmatprep.subr.mxu0 0.0
        %754 = vmatpush2.msra.mxu0 0.0
        %755 = vmatprep.subr.mxu0 0.0
        %756 = vmatpush2.msra.mxu0 0.0
        %757 = vmatprep.subr.mxu0 0.0
        %758 = vmatpush2.msra.mxu0 0.0
        %759 = vmatprep.subr.mxu0 0.0
        %760 = vmatpush2.msra.mxu0 0.0
        %761 = vmatprep.subr.mxu0 0.0
        %762 = vmatpush2.msra.mxu0 0.0
        %763 = vmatprep.subr.mxu0 0.0
        %764 = vmatpush2.msra.mxu0 0.0
        %765 = vmatprep.subr.mxu0 0.0
        %766 = vmatpush2.msra.mxu0 0.0
        %767 = vmatprep.subr.mxu0 0.0
        %768 = vmatpush2.msra.mxu0 0.0
        %769 = vmatprep.subr.mxu0 0.0
        %770 = vmatpush2.msra.mxu0 0.0
        %771 = vmatprep.subr.mxu0 0.0
        %772 = vmatpush2.msra.mxu0 0.0
        %773 = vmatprep.subr.mxu0 0.0
        %774 = vmatpush2.msra.mxu0 0.0
        %775 = vmatprep.subr.mxu0 0.0
        %776 = vmatpush2.msra.mxu0 0.0
        %777 = vmatprep.subr.mxu0 0.0
        %778 = vmatpush2.msra.mxu0 0.0
        %779 = vmatprep.subr.mxu0 0.0
        %780 = vmatpush2.msra.mxu0 0.0
        %781 = vmatprep.subr.mxu0 0.0
        %782 = vmatpush2.msra.mxu0 0.0
        %783 = vmatprep.subr.mxu0 0.0
        %784 = vmatpush2.msra.mxu0 0.0
        %785 = vmatprep.mubr.f32.mxu0 0.0
        %786 = vmatmul.mubr.f32.gmra.mxu0 %v716
        %v787 = vpop.f32.mrf.mxu0
        %v788 = vadd.f32 %v624, %v787
        %v789 = vpop.f32.mrf.mxu0
        %790 = vmatprep.mubr.f32.mxu0 0.0
        %791 = vmatmul.mubr.f32.gmra.mxu0 %v719
        %v792 = vpop.f32.mrf.mxu0
        %v793 = vadd.f32 %v624, %v792
        %v794 = vpop.f32.mrf.mxu0
        %795 = vdwg.mxu0
        %v796 = vmul.f32 %v788, 0.1
        %v797 = vmul.f32 %v793, 0.1
        %v798 = vmax.f32 %v788, %v796
        %v799 = vmax.f32 %v793, %v797
        %s800 = scalar_lea.vmem [#allocation2], 32
        %v801 = vld [vmem:[%s800] sm:$0xff]
        %v802 = vld [vmem:[%s800 + $0x8] sm:$0xff]
        %v804 = vsel %vm626, %v801, 0
        %v807 = vsel %vm626, %v802, 0
        %809 = vmatprep.subr.mxu0 0.0
        %810 = vmatpush1.msra.mxu0 0.0
        %811 = vmatprep.subr.mxu0 0.0
        %812 = vmatpush1.msra.mxu0 0.0
        %813 = vmatprep.subr.mxu0 0.0
        %814 = vmatpush1.msra.mxu0 0.0
        %815 = vmatprep.subr.mxu0 0.0
        %816 = vmatpush1.msra.mxu0 0.0
        %817 = vmatprep.subr.mxu0 0.0
        %818 = vmatpush1.msra.mxu0 0.0
        %819 = vmatprep.subr.mxu0 0.0
        %820 = vmatpush1.msra.mxu0 0.0
        %821 = vmatprep.subr.mxu0 0.0
        %822 = vmatpush1.msra.mxu0 0.0
        %823 = vmatprep.subr.mxu0 0.0
        %824 = vmatpush1.msra.mxu0 0.0
        %825 = vmatprep.subr.mxu0 0.0
        %826 = vmatpush1.msra.mxu0 0.0
        %827 = vmatprep.subr.mxu0 0.0
        %828 = vmatpush1.msra.mxu0 0.0
        %829 = vmatprep.subr.mxu0 0.0
        %830 = vmatpush1.msra.mxu0 %v616
        %831 = vmatprep.subr.mxu0 0.0
        %832 = vmatpush1.msra.mxu0 %v615
        %833 = vmatprep.subr.mxu0 0.0
        %834 = vmatpush1.msra.mxu0 %v614
        %835 = vmatprep.subr.mxu0 0.0
        %836 = vmatpush1.msra.mxu0 %v613
        %837 = vmatprep.subr.mxu0 0.0
        %838 = vmatpush1.msra.mxu0 %v612
        %839 = vmatprep.subr.mxu0 0.0
        %840 = vmatpush1.msra.mxu0 %v611
        %841 = vmatprep.subr.mxu0 0.0
        %842 = vmatpush2.msra.mxu0 0.0
        %843 = vmatprep.subr.mxu0 0.0
        %844 = vmatpush2.msra.mxu0 0.0
        %845 = vmatprep.subr.mxu0 0.0
        %846 = vmatpush2.msra.mxu0 0.0
        %847 = vmatprep.subr.mxu0 0.0
        %848 = vmatpush2.msra.mxu0 0.0
        %849 = vmatprep.subr.mxu0 0.0
        %850 = vmatpush2.msra.mxu0 0.0
        %851 = vmatprep.subr.mxu0 0.0
        %852 = vmatpush2.msra.mxu0 0.0
        %853 = vmatprep.subr.mxu0 0.0
        %854 = vmatpush2.msra.mxu0 0.0
        %855 = vmatprep.subr.mxu0 0.0
        %856 = vmatpush2.msra.mxu0 0.0
        %857 = vmatprep.subr.mxu0 0.0
        %858 = vmatpush2.msra.mxu0 0.0
        %859 = vmatprep.subr.mxu0 0.0
        %860 = vmatpush2.msra.mxu0 0.0
        %861 = vmatprep.subr.mxu0 0.0
        %862 = vmatpush2.msra.mxu0 0.0
        %863 = vmatprep.subr.mxu0 0.0
        %864 = vmatpush2.msra.mxu0 0.0
        %865 = vmatprep.subr.mxu0 0.0
        %866 = vmatpush2.msra.mxu0 0.0
        %867 = vmatprep.subr.mxu0 0.0
        %868 = vmatpush2.msra.mxu0 0.0
        %869 = vmatprep.subr.mxu0 0.0
        %870 = vmatpush2.msra.mxu0 0.0
        %871 = vmatprep.subr.mxu0 0.0
        %872 = vmatpush2.msra.mxu0 0.0
        %873 = vmatprep.mubr.f32.mxu0 0.0
        %874 = vmatmul.mubr.f32.gmra.mxu0 %v804
        %v875 = vpop.f32.mrf.mxu0
        %v876 = vadd.f32 %v624, %v875
        %v877 = vpop.f32.mrf.mxu0
        %878 = vmatprep.mubr.f32.mxu0 0.0
        %879 = vmatmul.mubr.f32.gmra.mxu0 %v807
        %v880 = vpop.f32.mrf.mxu0
        %v881 = vadd.f32 %v624, %v880
        %v882 = vpop.f32.mrf.mxu0
        %883 = vdwg.mxu0
        %v884 = vmul.f32 %v876, 0.1
        %v885 = vmul.f32 %v881, 0.1
        %v886 = vmax.f32 %v876, %v884
        %v887 = vmax.f32 %v881, %v885
        %s888 = scalar_lea.vmem [#allocation2], 48
        %v889 = vld [vmem:[%s888] sm:$0xff]
        %v890 = vld [vmem:[%s888 + $0x8] sm:$0xff]
        %v892 = vsel %vm626, %v889, 0
        %v895 = vsel %vm626, %v890, 0
        %897 = vmatprep.subr.mxu0 0.0
        %898 = vmatpush1.msra.mxu0 0.0
        %899 = vmatprep.subr.mxu0 0.0
        %900 = vmatpush1.msra.mxu0 0.0
        %901 = vmatprep.subr.mxu0 0.0
        %902 = vmatpush1.msra.mxu0 0.0
        %903 = vmatprep.subr.mxu0 0.0
        %904 = vmatpush1.msra.mxu0 0.0
        %905 = vmatprep.subr.mxu0 0.0
        %906 = vmatpush1.msra.mxu0 0.0
        %907 = vmatprep.subr.mxu0 0.0
        %908 = vmatpush1.msra.mxu0 0.0
        %909 = vmatprep.subr.mxu0 0.0
        %910 = vmatpush1.msra.mxu0 0.0
        %911 = vmatprep.subr.mxu0 0.0
        %912 = vmatpush1.msra.mxu0 0.0
        %913 = vmatprep.subr.mxu0 0.0
        %914 = vmatpush1.msra.mxu0 0.0
        %915 = vmatprep.subr.mxu0 0.0
        %916 = vmatpush1.msra.mxu0 0.0
        %917 = vmatprep.subr.mxu0 0.0
        %918 = vmatpush1.msra.mxu0 %v616
        %919 = vmatprep.subr.mxu0 0.0
        %920 = vmatpush1.msra.mxu0 %v615
        %921 = vmatprep.subr.mxu0 0.0
        %922 = vmatpush1.msra.mxu0 %v614
        %923 = vmatprep.subr.mxu0 0.0
        %924 = vmatpush1.msra.mxu0 %v613
        %925 = vmatprep.subr.mxu0 0.0
        %926 = vmatpush1.msra.mxu0 %v612
        %927 = vmatprep.subr.mxu0 0.0
        %928 = vmatpush1.msra.mxu0 %v611
        %929 = vmatprep.subr.mxu0 0.0
        %930 = vmatpush2.msra.mxu0 0.0
        %931 = vmatprep.subr.mxu0 0.0
        %932 = vmatpush2.msra.mxu0 0.0
        %933 = vmatprep.subr.mxu0 0.0
        %934 = vmatpush2.msra.mxu0 0.0
        %935 = vmatprep.subr.mxu0 0.0
        %936 = vmatpush2.msra.mxu0 0.0
        %937 = vmatprep.subr.mxu0 0.0
        %938 = vmatpush2.msra.mxu0 0.0
        %939 = vmatprep.subr.mxu0 0.0
        %940 = vmatpush2.msra.mxu0 0.0
        %941 = vmatprep.subr.mxu0 0.0
        %942 = vmatpush2.msra.mxu0 0.0
        %943 = vmatprep.subr.mxu0 0.0
        %944 = vmatpush2.msra.mxu0 0.0
        %945 = vmatprep.subr.mxu0 0.0
        %946 = vmatpush2.msra.mxu0 0.0
        %947 = vmatprep.subr.mxu0 0.0
        %948 = vmatpush2.msra.mxu0 0.0
        %949 = vmatprep.subr.mxu0 0.0
        %950 = vmatpush2.msra.mxu0 0.0
        %951 = vmatprep.subr.mxu0 0.0
        %952 = vmatpush2.msra.mxu0 0.0
        %953 = vmatprep.subr.mxu0 0.0
        %954 = vmatpush2.msra.mxu0 0.0
        %955 = vmatprep.subr.mxu0 0.0
        %956 = vmatpush2.msra.mxu0 0.0
        %957 = vmatprep.subr.mxu0 0.0
        %958 = vmatpush2.msra.mxu0 0.0
        %959 = vmatprep.subr.mxu0 0.0
        %960 = vmatpush2.msra.mxu0 0.0
        %961 = vmatprep.mubr.f32.mxu0 0.0
        %962 = vmatmul.mubr.f32.gmra.mxu0 %v892
        %v963 = vpop.f32.mrf.mxu0
        %v964 = vadd.f32 %v624, %v963
        %v965 = vpop.f32.mrf.mxu0
        %966 = vmatprep.mubr.f32.mxu0 0.0
        %967 = vmatmul.mubr.f32.gmra.mxu0 %v895
        %v968 = vpop.f32.mrf.mxu0
        %v969 = vadd.f32 %v624, %v968
        %v970 = vpop.f32.mrf.mxu0
        %971 = vdwg.mxu0
        %v972 = vmul.f32 %v964, 0.1
        %v973 = vmul.f32 %v969, 0.1
        %v974 = vmax.f32 %v964, %v972
        %v975 = vmax.f32 %v969, %v973
        %v978 = vcombine.high %v710, %v710
        %v980 = vunpack.c.l.s4 1966171168
        %v981 = vunpack.c.0.s8 %v980
        %v982 = vlaneseq
        %v983 = vshrl.u32 %v982, 7
        %v984 = vsub.s32 %v981, %v983
        %v985 = vrot.slane %v710, %v984
        %v987 = vunpack.c.l.s4 1966171168
        %v988 = vunpack.c.0.s8 %v987
        %v989 = vlaneseq
        %v990 = vshrl.u32 %v989, 7
        %v991 = vsub.s32 %v988, %v990
        %v992 = vrot.slane %v978, %v991
        %v993 = vcombine.high %v985, %v985
        %v994 = vcombine.high %v992, %v992
        %v996 = vunpack.c.l.s4 1966171168
        %v997 = vunpack.c.0.s8 %v996
        %v998 = vlaneseq
        %v999 = vshrl.u32 %v998, 7
        %v1000 = vsub.s32 %v997, %v999
        %v1001 = vrot.slane %v985, %v1000
        %v1003 = vunpack.c.l.s4 1966171168
        %v1004 = vunpack.c.0.s8 %v1003
        %v1005 = vlaneseq
        %v1006 = vshrl.u32 %v1005, 7
        %v1007 = vsub.s32 %v1004, %v1006
        %v1008 = vrot.slane %v992, %v1007
        %v1010 = vunpack.c.l.s4 1966171168
        %v1011 = vunpack.c.0.s8 %v1010
        %v1012 = vlaneseq
        %v1013 = vshrl.u32 %v1012, 7
        %v1014 = vsub.s32 %v1011, %v1013
        %v1015 = vrot.slane %v993, %v1014
        %v1017 = vunpack.c.l.s4 1966171168
        %v1018 = vunpack.c.0.s8 %v1017
        %v1019 = vlaneseq
        %v1020 = vshrl.u32 %v1019, 7
        %v1021 = vsub.s32 %v1018, %v1020
        %v1022 = vrot.slane %v994, %v1021
        %v1023 = vcombine.high %v1001, %v1001
        %v1024 = vcombine.high %v1008, %v1008
        %v1025 = vcombine.high %v1015, %v1015
        %v1026 = vcombine.high %v1022, %v1022
        %v1027 = vcombine.high %v711, %v711
        %v1029 = vunpack.c.l.s4 1966171168
        %v1030 = vunpack.c.0.s8 %v1029
        %v1031 = vlaneseq
        %v1032 = vshrl.u32 %v1031, 7
        %v1033 = vsub.s32 %v1030, %v1032
        %v1034 = vrot.slane %v711, %v1033
        %v1036 = vunpack.c.l.s4 1966171168
        %v1037 = vunpack.c.0.s8 %v1036
        %v1038 = vlaneseq
        %v1039 = vshrl.u32 %v1038, 7
        %v1040 = vsub.s32 %v1037, %v1039
        %v1041 = vrot.slane %v1027, %v1040
        %v1042 = vcombine.high %v1034, %v1034
        %v1043 = vcombine.high %v1041, %v1041
        %v1045 = vunpack.c.l.s4 1966171168
        %v1046 = vunpack.c.0.s8 %v1045
        %v1047 = vlaneseq
        %v1048 = vshrl.u32 %v1047, 7
        %v1049 = vsub.s32 %v1046, %v1048
        %v1050 = vrot.slane %v1034, %v1049
        %v1052 = vunpack.c.l.s4 1966171168
        %v1053 = vunpack.c.0.s8 %v1052
        %v1054 = vlaneseq
        %v1055 = vshrl.u32 %v1054, 7
        %v1056 = vsub.s32 %v1053, %v1055
        %v1057 = vrot.slane %v1041, %v1056
        %v1059 = vunpack.c.l.s4 1966171168
        %v1060 = vunpack.c.0.s8 %v1059
        %v1061 = vlaneseq
        %v1062 = vshrl.u32 %v1061, 7
        %v1063 = vsub.s32 %v1060, %v1062
        %v1064 = vrot.slane %v1042, %v1063
        %v1066 = vunpack.c.l.s4 1966171168
        %v1067 = vunpack.c.0.s8 %v1066
        %v1068 = vlaneseq
        %v1069 = vshrl.u32 %v1068, 7
        %v1070 = vsub.s32 %v1067, %v1069
        %v1071 = vrot.slane %v1043, %v1070
        %v1072 = vcombine.high %v1050, %v1050
        %v1073 = vcombine.high %v1057, %v1057
        %v1074 = vcombine.high %v1064, %v1064
        %v1075 = vcombine.high %v1071, %v1071
        %v1094 = vcombine.high %v798, %v798
        %v1096 = vunpack.c.l.s4 1966171168
        %v1097 = vunpack.c.0.s8 %v1096
        %v1098 = vlaneseq
        %v1099 = vshrl.u32 %v1098, 7
        %v1100 = vsub.s32 %v1097, %v1099
        %v1101 = vrot.slane %v798, %v1100
        %v1103 = vunpack.c.l.s4 1966171168
        %v1104 = vunpack.c.0.s8 %v1103
        %v1105 = vlaneseq
        %v1106 = vshrl.u32 %v1105, 7
        %v1107 = vsub.s32 %v1104, %v1106
        %v1108 = vrot.slane %v1094, %v1107
        %v1109 = vcombine.high %v1101, %v1101
        %v1110 = vcombine.high %v1108, %v1108
        %v1112 = vunpack.c.l.s4 1966171168
        %v1113 = vunpack.c.0.s8 %v1112
        %v1114 = vlaneseq
        %v1115 = vshrl.u32 %v1114, 7
        %v1116 = vsub.s32 %v1113, %v1115
        %v1117 = vrot.slane %v1101, %v1116
        %v1119 = vunpack.c.l.s4 1966171168
        %v1120 = vunpack.c.0.s8 %v1119
        %v1121 = vlaneseq
        %v1122 = vshrl.u32 %v1121, 7
        %v1123 = vsub.s32 %v1120, %v1122
        %v1124 = vrot.slane %v1108, %v1123
        %v1126 = vunpack.c.l.s4 1966171168
        %v1127 = vunpack.c.0.s8 %v1126
        %v1128 = vlaneseq
        %v1129 = vshrl.u32 %v1128, 7
        %v1130 = vsub.s32 %v1127, %v1129
        %v1131 = vrot.slane %v1109, %v1130
        %v1133 = vunpack.c.l.s4 1966171168
        %v1134 = vunpack.c.0.s8 %v1133
        %v1135 = vlaneseq
        %v1136 = vshrl.u32 %v1135, 7
        %v1137 = vsub.s32 %v1134, %v1136
        %v1138 = vrot.slane %v1110, %v1137
        %v1139 = vcombine.high %v1117, %v1117
        %v1140 = vcombine.high %v1124, %v1124
        %v1141 = vcombine.high %v1131, %v1131
        %v1142 = vcombine.high %v1138, %v1138
        %v1143 = vcombine.high %v799, %v799
        %v1145 = vunpack.c.l.s4 1966171168
        %v1146 = vunpack.c.0.s8 %v1145
        %v1147 = vlaneseq
        %v1148 = vshrl.u32 %v1147, 7
        %v1149 = vsub.s32 %v1146, %v1148
        %v1150 = vrot.slane %v799, %v1149
        %v1152 = vunpack.c.l.s4 1966171168
        %v1153 = vunpack.c.0.s8 %v1152
        %v1154 = vlaneseq
        %v1155 = vshrl.u32 %v1154, 7
        %v1156 = vsub.s32 %v1153, %v1155
        %v1157 = vrot.slane %v1143, %v1156
        %v1158 = vcombine.high %v1150, %v1150
        %v1159 = vcombine.high %v1157, %v1157
        %v1161 = vunpack.c.l.s4 1966171168
        %v1162 = vunpack.c.0.s8 %v1161
        %v1163 = vlaneseq
        %v1164 = vshrl.u32 %v1163, 7
        %v1165 = vsub.s32 %v1162, %v1164
        %v1166 = vrot.slane %v1150, %v1165
        %v1168 = vunpack.c.l.s4 1966171168
        %v1169 = vunpack.c.0.s8 %v1168
        %v1170 = vlaneseq
        %v1171 = vshrl.u32 %v1170, 7
        %v1172 = vsub.s32 %v1169, %v1171
        %v1173 = vrot.slane %v1157, %v1172
        %v1175 = vunpack.c.l.s4 1966171168
        %v1176 = vunpack.c.0.s8 %v1175
        %v1177 = vlaneseq
        %v1178 = vshrl.u32 %v1177, 7
        %v1179 = vsub.s32 %v1176, %v1178
        %v1180 = vrot.slane %v1158, %v1179
        %v1182 = vunpack.c.l.s4 1966171168
        %v1183 = vunpack.c.0.s8 %v1182
        %v1184 = vlaneseq
        %v1185 = vshrl.u32 %v1184, 7
        %v1186 = vsub.s32 %v1183, %v1185
        %v1187 = vrot.slane %v1159, %v1186
        %v1188 = vcombine.high %v1166, %v1166
        %v1189 = vcombine.high %v1173, %v1173
        %v1190 = vcombine.high %v1180, %v1180
        %v1191 = vcombine.high %v1187, %v1187
        %v1194 = vcombine.high %v886, %v886
        %v1196 = vunpack.c.l.s4 1966171168
        %v1197 = vunpack.c.0.s8 %v1196
        %v1198 = vlaneseq
        %v1199 = vshrl.u32 %v1198, 7
        %v1200 = vsub.s32 %v1197, %v1199
        %v1201 = vrot.slane %v886, %v1200
        %v1203 = vunpack.c.l.s4 1966171168
        %v1204 = vunpack.c.0.s8 %v1203
        %v1205 = vlaneseq
        %v1206 = vshrl.u32 %v1205, 7
        %v1207 = vsub.s32 %v1204, %v1206
        %v1208 = vrot.slane %v1194, %v1207
        %v1209 = vcombine.high %v1201, %v1201
        %v1210 = vcombine.high %v1208, %v1208
        %v1212 = vunpack.c.l.s4 1966171168
        %v1213 = vunpack.c.0.s8 %v1212
        %v1214 = vlaneseq
        %v1215 = vshrl.u32 %v1214, 7
        %v1216 = vsub.s32 %v1213, %v1215
        %v1217 = vrot.slane %v1201, %v1216
        %v1219 = vunpack.c.l.s4 1966171168
        %v1220 = vunpack.c.0.s8 %v1219
        %v1221 = vlaneseq
        %v1222 = vshrl.u32 %v1221, 7
        %v1223 = vsub.s32 %v1220, %v1222
        %v1224 = vrot.slane %v1208, %v1223
        %v1226 = vunpack.c.l.s4 1966171168
        %v1227 = vunpack.c.0.s8 %v1226
        %v1228 = vlaneseq
        %v1229 = vshrl.u32 %v1228, 7
        %v1230 = vsub.s32 %v1227, %v1229
        %v1231 = vrot.slane %v1209, %v1230
        %v1233 = vunpack.c.l.s4 1966171168
        %v1234 = vunpack.c.0.s8 %v1233
        %v1235 = vlaneseq
        %v1236 = vshrl.u32 %v1235, 7
        %v1237 = vsub.s32 %v1234, %v1236
        %v1238 = vrot.slane %v1210, %v1237
        %v1239 = vcombine.high %v1217, %v1217
        %v1240 = vcombine.high %v1224, %v1224
        %v1241 = vcombine.high %v1231, %v1231
        %v1242 = vcombine.high %v1238, %v1238
        %v1243 = vcombine.high %v887, %v887
        %v1245 = vunpack.c.l.s4 1966171168
        %v1246 = vunpack.c.0.s8 %v1245
        %v1247 = vlaneseq
        %v1248 = vshrl.u32 %v1247, 7
        %v1249 = vsub.s32 %v1246, %v1248
        %v1250 = vrot.slane %v887, %v1249
        %v1252 = vunpack.c.l.s4 1966171168
        %v1253 = vunpack.c.0.s8 %v1252
        %v1254 = vlaneseq
        %v1255 = vshrl.u32 %v1254, 7
        %v1256 = vsub.s32 %v1253, %v1255
        %v1257 = vrot.slane %v1243, %v1256
        %v1258 = vcombine.high %v1250, %v1250
        %v1259 = vcombine.high %v1257, %v1257
        %v1261 = vunpack.c.l.s4 1966171168
        %v1262 = vunpack.c.0.s8 %v1261
        %v1263 = vlaneseq
        %v1264 = vshrl.u32 %v1263, 7
        %v1265 = vsub.s32 %v1262, %v1264
        %v1266 = vrot.slane %v1250, %v1265
        %v1268 = vunpack.c.l.s4 1966171168
        %v1269 = vunpack.c.0.s8 %v1268
        %v1270 = vlaneseq
        %v1271 = vshrl.u32 %v1270, 7
        %v1272 = vsub.s32 %v1269, %v1271
        %v1273 = vrot.slane %v1257, %v1272
        %v1275 = vunpack.c.l.s4 1966171168
        %v1276 = vunpack.c.0.s8 %v1275
        %v1277 = vlaneseq
        %v1278 = vshrl.u32 %v1277, 7
        %v1279 = vsub.s32 %v1276, %v1278
        %v1280 = vrot.slane %v1258, %v1279
        %v1282 = vunpack.c.l.s4 1966171168
        %v1283 = vunpack.c.0.s8 %v1282
        %v1284 = vlaneseq
        %v1285 = vshrl.u32 %v1284, 7
        %v1286 = vsub.s32 %v1283, %v1285
        %v1287 = vrot.slane %v1259, %v1286
        %v1288 = vcombine.high %v1266, %v1266
        %v1289 = vcombine.high %v1273, %v1273
        %v1290 = vcombine.high %v1280, %v1280
        %v1291 = vcombine.high %v1287, %v1287
        %v1294 = vcombine.high %v974, %v974
        %v1296 = vunpack.c.l.s4 1966171168
        %v1297 = vunpack.c.0.s8 %v1296
        %v1298 = vlaneseq
        %v1299 = vshrl.u32 %v1298, 7
        %v1300 = vsub.s32 %v1297, %v1299
        %v1301 = vrot.slane %v974, %v1300
        %v1303 = vunpack.c.l.s4 1966171168
        %v1304 = vunpack.c.0.s8 %v1303
        %v1305 = vlaneseq
        %v1306 = vshrl.u32 %v1305, 7
        %v1307 = vsub.s32 %v1304, %v1306
        %v1308 = vrot.slane %v1294, %v1307
        %v1309 = vcombine.high %v1301, %v1301
        %v1310 = vcombine.high %v1308, %v1308
        %v1312 = vunpack.c.l.s4 1966171168
        %v1313 = vunpack.c.0.s8 %v1312
        %v1314 = vlaneseq
        %v1315 = vshrl.u32 %v1314, 7
        %v1316 = vsub.s32 %v1313, %v1315
        %v1317 = vrot.slane %v1301, %v1316
        %v1319 = vunpack.c.l.s4 1966171168
        %v1320 = vunpack.c.0.s8 %v1319
        %v1321 = vlaneseq
        %v1322 = vshrl.u32 %v1321, 7
        %v1323 = vsub.s32 %v1320, %v1322
        %v1324 = vrot.slane %v1308, %v1323
        %v1326 = vunpack.c.l.s4 1966171168
        %v1327 = vunpack.c.0.s8 %v1326
        %v1328 = vlaneseq
        %v1329 = vshrl.u32 %v1328, 7
        %v1330 = vsub.s32 %v1327, %v1329
        %v1331 = vrot.slane %v1309, %v1330
        %v1333 = vunpack.c.l.s4 1966171168
        %v1334 = vunpack.c.0.s8 %v1333
        %v1335 = vlaneseq
        %v1336 = vshrl.u32 %v1335, 7
        %v1337 = vsub.s32 %v1334, %v1336
        %v1338 = vrot.slane %v1310, %v1337
        %v1339 = vcombine.high %v1317, %v1317
        %v1340 = vcombine.high %v1324, %v1324
        %v1341 = vcombine.high %v1331, %v1331
        %v1342 = vcombine.high %v1338, %v1338
        %v1343 = vcombine.high %v975, %v975
        %v1345 = vunpack.c.l.s4 1966171168
        %v1346 = vunpack.c.0.s8 %v1345
        %v1347 = vlaneseq
        %v1348 = vshrl.u32 %v1347, 7
        %v1349 = vsub.s32 %v1346, %v1348
        %v1350 = vrot.slane %v975, %v1349
        %v1352 = vunpack.c.l.s4 1966171168
        %v1353 = vunpack.c.0.s8 %v1352
        %v1354 = vlaneseq
        %v1355 = vshrl.u32 %v1354, 7
        %v1356 = vsub.s32 %v1353, %v1355
        %v1357 = vrot.slane %v1343, %v1356
        %v1358 = vcombine.high %v1350, %v1350
        %v1359 = vcombine.high %v1357, %v1357
        %v1361 = vunpack.c.l.s4 1966171168
        %v1362 = vunpack.c.0.s8 %v1361
        %v1363 = vlaneseq
        %v1364 = vshrl.u32 %v1363, 7
        %v1365 = vsub.s32 %v1362, %v1364
        %v1366 = vrot.slane %v1350, %v1365
        %v1368 = vunpack.c.l.s4 1966171168
        %v1369 = vunpack.c.0.s8 %v1368
        %v1370 = vlaneseq
        %v1371 = vshrl.u32 %v1370, 7
        %v1372 = vsub.s32 %v1369, %v1371
        %v1373 = vrot.slane %v1357, %v1372
        %v1375 = vunpack.c.l.s4 1966171168
        %v1376 = vunpack.c.0.s8 %v1375
        %v1377 = vlaneseq
        %v1378 = vshrl.u32 %v1377, 7
        %v1379 = vsub.s32 %v1376, %v1378
        %v1380 = vrot.slane %v1358, %v1379
        %v1382 = vunpack.c.l.s4 1966171168
        %v1383 = vunpack.c.0.s8 %v1382
        %v1384 = vlaneseq
        %v1385 = vshrl.u32 %v1384, 7
        %v1386 = vsub.s32 %v1383, %v1385
        %v1387 = vrot.slane %v1359, %v1386
        %v1388 = vcombine.high %v1366, %v1366
        %v1389 = vcombine.high %v1373, %v1373
        %v1390 = vcombine.high %v1380, %v1380
        %v1391 = vcombine.high %v1387, %v1387
        %v1392 = vlaneseq
        %v1393 = vshrl.u32 %v1392, 7
        %v1394 = vsub.s32 0, %v1393
        %v1395 = vrot.slane %v1117, %v1394
        %v1396 = vlaneseq
        %v1397 = vshrl.u32 %v1396, 7
        %v1398 = vsub.s32 0, %v1397
        %v1399 = vrot.slane %v1131, %v1398
        %v1400 = vlaneseq
        %v1401 = vshrl.u32 %v1400, 7
        %v1402 = vsub.s32 0, %v1401
        %v1403 = vrot.slane %v1139, %v1402
        %v1404 = vlaneseq
        %v1405 = vshrl.u32 %v1404, 7
        %v1406 = vsub.s32 0, %v1405
        %v1407 = vrot.slane %v1141, %v1406
        %v1408 = vlaneseq
        %v1409 = vshrl.u32 %v1408, 7
        %v1410 = vsub.s32 0, %v1409
        %v1411 = vrot.slane %v1124, %v1410
        %v1412 = vlaneseq
        %v1413 = vshrl.u32 %v1412, 7
        %v1414 = vsub.s32 0, %v1413
        %v1415 = vrot.slane %v1138, %v1414
        %v1416 = vlaneseq
        %v1417 = vshrl.u32 %v1416, 7
        %v1418 = vsub.s32 0, %v1417
        %v1419 = vrot.slane %v1140, %v1418
        %v1420 = vlaneseq
        %v1421 = vshrl.u32 %v1420, 7
        %v1422 = vsub.s32 0, %v1421
        %v1423 = vrot.slane %v1142, %v1422
        %v1424 = vlaneseq
        %v1425 = vshrl.u32 %v1424, 7
        %v1426 = vsub.s32 0, %v1425
        %v1427 = vrot.slane %v1166, %v1426
        %v1428 = vlaneseq
        %v1429 = vshrl.u32 %v1428, 7
        %v1430 = vsub.s32 0, %v1429
        %v1431 = vrot.slane %v1180, %v1430
        %v1432 = vlaneseq
        %v1433 = vshrl.u32 %v1432, 7
        %v1434 = vsub.s32 0, %v1433
        %v1435 = vrot.slane %v1188, %v1434
        %v1436 = vlaneseq
        %v1437 = vshrl.u32 %v1436, 7
        %v1438 = vsub.s32 0, %v1437
        %v1439 = vrot.slane %v1190, %v1438
        %v1440 = vlaneseq
        %v1441 = vshrl.u32 %v1440, 7
        %v1442 = vsub.s32 0, %v1441
        %v1443 = vrot.slane %v1173, %v1442
        %v1444 = vlaneseq
        %v1445 = vshrl.u32 %v1444, 7
        %v1446 = vsub.s32 0, %v1445
        %v1447 = vrot.slane %v1187, %v1446
        %v1448 = vlaneseq
        %v1449 = vshrl.u32 %v1448, 7
        %v1450 = vsub.s32 0, %v1449
        %v1451 = vrot.slane %v1189, %v1450
        %v1452 = vlaneseq
        %v1453 = vshrl.u32 %v1452, 7
        %v1454 = vsub.s32 0, %v1453
        %v1455 = vrot.slane %v1191, %v1454
        %v1472 = vlaneseq
        %v1473 = vshrl.u32 %v1472, 7
        %v1474 = vsub.s32 0, %v1473
        %v1475 = vrot.slane %v1217, %v1474
        %v1476 = vlaneseq
        %v1477 = vshrl.u32 %v1476, 7
        %v1478 = vsub.s32 0, %v1477
        %v1479 = vrot.slane %v1231, %v1478
        %v1480 = vlaneseq
        %v1481 = vshrl.u32 %v1480, 7
        %v1482 = vsub.s32 0, %v1481
        %v1483 = vrot.slane %v1239, %v1482
        %v1484 = vlaneseq
        %v1485 = vshrl.u32 %v1484, 7
        %v1486 = vsub.s32 0, %v1485
        %v1487 = vrot.slane %v1241, %v1486
        %v1488 = vlaneseq
        %v1489 = vshrl.u32 %v1488, 7
        %v1490 = vsub.s32 0, %v1489
        %v1491 = vrot.slane %v1224, %v1490
        %v1492 = vlaneseq
        %v1493 = vshrl.u32 %v1492, 7
        %v1494 = vsub.s32 0, %v1493
        %v1495 = vrot.slane %v1238, %v1494
        %v1496 = vlaneseq
        %v1497 = vshrl.u32 %v1496, 7
        %v1498 = vsub.s32 0, %v1497
        %v1499 = vrot.slane %v1240, %v1498
        %v1500 = vlaneseq
        %v1501 = vshrl.u32 %v1500, 7
        %v1502 = vsub.s32 0, %v1501
        %v1503 = vrot.slane %v1242, %v1502
        %v1504 = vlaneseq
        %v1505 = vshrl.u32 %v1504, 7
        %v1506 = vsub.s32 0, %v1505
        %v1507 = vrot.slane %v1266, %v1506
        %v1508 = vlaneseq
        %v1509 = vshrl.u32 %v1508, 7
        %v1510 = vsub.s32 0, %v1509
        %v1511 = vrot.slane %v1280, %v1510
        %v1512 = vlaneseq
        %v1513 = vshrl.u32 %v1512, 7
        %v1514 = vsub.s32 0, %v1513
        %v1515 = vrot.slane %v1288, %v1514
        %v1516 = vlaneseq
        %v1517 = vshrl.u32 %v1516, 7
        %v1518 = vsub.s32 0, %v1517
        %v1519 = vrot.slane %v1290, %v1518
        %v1520 = vlaneseq
        %v1521 = vshrl.u32 %v1520, 7
        %v1522 = vsub.s32 0, %v1521
        %v1523 = vrot.slane %v1273, %v1522
        %v1524 = vlaneseq
        %v1525 = vshrl.u32 %v1524, 7
        %v1526 = vsub.s32 0, %v1525
        %v1527 = vrot.slane %v1287, %v1526
        %v1528 = vlaneseq
        %v1529 = vshrl.u32 %v1528, 7
        %v1530 = vsub.s32 0, %v1529
        %v1531 = vrot.slane %v1289, %v1530
        %v1532 = vlaneseq
        %v1533 = vshrl.u32 %v1532, 7
        %v1534 = vsub.s32 0, %v1533
        %v1535 = vrot.slane %v1291, %v1534
        %v1552 = vlaneseq
        %v1553 = vshrl.u32 %v1552, 7
        %v1554 = vsub.s32 0, %v1553
        %v1555 = vrot.slane %v1317, %v1554
        %v1556 = vlaneseq
        %v1557 = vshrl.u32 %v1556, 7
        %v1558 = vsub.s32 0, %v1557
        %v1559 = vrot.slane %v1331, %v1558
        %v1560 = vlaneseq
        %v1561 = vshrl.u32 %v1560, 7
        %v1562 = vsub.s32 0, %v1561
        %v1563 = vrot.slane %v1339, %v1562
        %v1564 = vlaneseq
        %v1565 = vshrl.u32 %v1564, 7
        %v1566 = vsub.s32 0, %v1565
        %v1567 = vrot.slane %v1341, %v1566
        %v1568 = vlaneseq
        %v1569 = vshrl.u32 %v1568, 7
        %v1570 = vsub.s32 0, %v1569
        %v1571 = vrot.slane %v1324, %v1570
        %v1572 = vlaneseq
        %v1573 = vshrl.u32 %v1572, 7
        %v1574 = vsub.s32 0, %v1573
        %v1575 = vrot.slane %v1338, %v1574
        %v1576 = vlaneseq
        %v1577 = vshrl.u32 %v1576, 7
        %v1578 = vsub.s32 0, %v1577
        %v1579 = vrot.slane %v1340, %v1578
        %v1580 = vlaneseq
        %v1581 = vshrl.u32 %v1580, 7
        %v1582 = vsub.s32 0, %v1581
        %v1583 = vrot.slane %v1342, %v1582
        %v1584 = vlaneseq
        %v1585 = vshrl.u32 %v1584, 7
        %v1586 = vsub.s32 0, %v1585
        %v1587 = vrot.slane %v1366, %v1586
        %v1588 = vlaneseq
        %v1589 = vshrl.u32 %v1588, 7
        %v1590 = vsub.s32 0, %v1589
        %v1591 = vrot.slane %v1380, %v1590
        %v1592 = vlaneseq
        %v1593 = vshrl.u32 %v1592, 7
        %v1594 = vsub.s32 0, %v1593
        %v1595 = vrot.slane %v1388, %v1594
        %v1596 = vlaneseq
        %v1597 = vshrl.u32 %v1596, 7
        %v1598 = vsub.s32 0, %v1597
        %v1599 = vrot.slane %v1390, %v1598
        %v1600 = vlaneseq
        %v1601 = vshrl.u32 %v1600, 7
        %v1602 = vsub.s32 0, %v1601
        %v1603 = vrot.slane %v1373, %v1602
        %v1604 = vlaneseq
        %v1605 = vshrl.u32 %v1604, 7
        %v1606 = vsub.s32 0, %v1605
        %v1607 = vrot.slane %v1387, %v1606
        %v1608 = vlaneseq
        %v1609 = vshrl.u32 %v1608, 7
        %v1610 = vsub.s32 0, %v1609
        %v1611 = vrot.slane %v1389, %v1610
        %v1612 = vlaneseq
        %v1613 = vshrl.u32 %v1612, 7
        %v1614 = vsub.s32 0, %v1613
        %v1615 = vrot.slane %v1391, %v1614
        %vm1632 = vcmask 1040384
        %v1633 = vsel %vm1632, %v1001, %v1395
        %v1634 = vsel %vm1632, %v1015, %v1399
        %v1635 = vsel %vm1632, %v1023, %v1403
        %v1636 = vsel %vm1632, %v1025, %v1407
        %v1637 = vsel %vm1632, %v1008, %v1411
        %v1638 = vsel %vm1632, %v1022, %v1415
        %v1639 = vsel %vm1632, %v1024, %v1419
        %v1640 = vsel %vm1632, %v1026, %v1423
        %v1641 = vsel %vm1632, %v1050, %v1427
        %v1642 = vsel %vm1632, %v1064, %v1431
        %v1643 = vsel %vm1632, %v1072, %v1435
        %v1644 = vsel %vm1632, %v1074, %v1439
        %v1645 = vsel %vm1632, %v1057, %v1443
        %v1646 = vsel %vm1632, %v1071, %v1447
        %v1647 = vsel %vm1632, %v1073, %v1451
        %v1648 = vsel %vm1632, %v1075, %v1455
        %vm1649 = vcmask 1041408
        %v1650 = vsel %vm1649, %v1633, %v1475
        %v1651 = vsel %vm1649, %v1634, %v1479
        %v1652 = vsel %vm1649, %v1635, %v1483
        %v1653 = vsel %vm1649, %v1636, %v1487
        %v1654 = vsel %vm1649, %v1637, %v1491
        %v1655 = vsel %vm1649, %v1638, %v1495
        %v1656 = vsel %vm1649, %v1639, %v1499
        %v1657 = vsel %vm1649, %v1640, %v1503
        %v1658 = vsel %vm1649, %v1641, %v1507
        %v1659 = vsel %vm1649, %v1642, %v1511
        %v1660 = vsel %vm1649, %v1643, %v1515
        %v1661 = vsel %vm1649, %v1644, %v1519
        %v1662 = vsel %vm1649, %v1645, %v1523
        %v1663 = vsel %vm1649, %v1646, %v1527
        %v1664 = vsel %vm1649, %v1647, %v1531
        %v1665 = vsel %vm1649, %v1648, %v1535
        %vm1666 = vcmask 1042432
        %v1667 = vsel %vm1666, %v1650, %v1555
        %v1668 = vsel %vm1666, %v1651, %v1559
        %v1669 = vsel %vm1666, %v1652, %v1563
        %v1670 = vsel %vm1666, %v1653, %v1567
        %v1671 = vsel %vm1666, %v1654, %v1571
        %v1672 = vsel %vm1666, %v1655, %v1575
        %v1673 = vsel %vm1666, %v1656, %v1579
        %v1674 = vsel %vm1666, %v1657, %v1583
        %v1675 = vsel %vm1666, %v1658, %v1587
        %v1676 = vsel %vm1666, %v1659, %v1591
        %v1677 = vsel %vm1666, %v1660, %v1595
        %v1678 = vsel %vm1666, %v1661, %v1599
        %v1679 = vsel %vm1666, %v1662, %v1603
        %v1680 = vsel %vm1666, %v1663, %v1607
        %v1681 = vsel %vm1666, %v1664, %v1611
        %v1682 = vsel %vm1666, %v1665, %v1615
        %vm1683 = vcmask 257024
        %1684 = vst.msk [vmem:[%s202] sm:$0xf] %vm1683, %v1667
        %1685 = vst.msk [vmem:[%s202 + $0x4] sm:$0xf] %vm1683, %v1668
        %1686 = vst.msk [vmem:[%s202 + $0x8] sm:$0xf] %vm1683, %v1669
        %1687 = vst.msk [vmem:[%s202 + $0xc] sm:$0xf] %vm1683, %v1670
        %1688 = vst.msk [vmem:[%s202 + $0x10] sm:$0xf] %vm1683, %v1671
        %1689 = vst.msk [vmem:[%s202 + $0x14] sm:$0xf] %vm1683, %v1672
        %1690 = vst.msk [vmem:[%s202 + $0x18] sm:$0xf] %vm1683, %v1673
        %1691 = vst.msk [vmem:[%s202 + $0x1c] sm:$0xf] %vm1683, %v1674
        %1692 = vst.msk [vmem:[%s202 + $0x20] sm:$0xf] %vm1683, %v1675
        %1693 = vst.msk [vmem:[%s202 + $0x24] sm:$0xf] %vm1683, %v1676
        %1694 = vst.msk [vmem:[%s202 + $0x28] sm:$0xf] %vm1683, %v1677
        %1695 = vst.msk [vmem:[%s202 + $0x2c] sm:$0xf] %vm1683, %v1678
        %1696 = vst.msk [vmem:[%s202 + $0x30] sm:$0xf] %vm1683, %v1679
        %1697 = vst.msk [vmem:[%s202 + $0x34] sm:$0xf] %vm1683, %v1680
        %1698 = vst.msk [vmem:[%s202 + $0x38] sm:$0xf] %vm1683, %v1681
        %1699 = vst.msk [vmem:[%s202 + $0x3c] sm:$0xf] %vm1683, %v1682
        %s1700 = sand.u32 %s117, 1
        %s1701 = scalar_lea.sflag [#allocation4], %s1700
        %s1702 = sand.u32 %s117, 1
        %s1703 = smul.addr %s1702, 64
        %s1704 = scalar_lea.vmem [#allocation3], %s1703
        // Predicated region
        $region37: #{tpu_custom_call.1} parent=31 // pred_check
          %p1705 = pneg %p127
        $region38: #{tpu_custom_call.1} parent=31 // pred_check_branch
          %1707 = sbr.rel (%p1705) target = $region40
        $region39: #{tpu_custom_call.1} parent=31 // pred_region
          %s1708 = smul.u32 16, %s21
          %s1710 = ssub.s32 1024, 1024
          %1711 = vsyncadd %s1701, %s1710
          %s1712 = sadd.s32 %s22, %s1708
          %s1713 = smul.addr %s1712, 64
          %s1714 = scalar_lea.hbm %s3, %s1713
          %s1715 = sshll.u32 %s1704, 4
          %s1716 = int_to_ptr.vmem [resolvable:$true] %s1715
          %1721 = dma.vmem_to_hbm [thread:$0]  %s1716, 1024, %s1714, %s1701, 64, 64, 4
        $region40: #{tpu_custom_call.1} parent=31 // pred_fallthru
          _
      $region32: #{tpu_custom_call.1} parent=5 // pred_fallthru
        _
      %p1722 = scmp.le.s32.totalorder 2, %s12
      // Predicated region
      $region41: #{tpu_custom_call.1} parent=5 // pred_check
        %p1723 = pneg %p1722
      $region42: #{tpu_custom_call.1} parent=5 // pred_check_branch
        %1725 = sbr.rel (%p1723) target = $region44
      $region43: #{tpu_custom_call.1} parent=5 // pred_region
        %s1726 = ssub.s32 %s12, 2
        // Predicated region
        $region45: #{tpu_custom_call.1} parent=43 // pred_check
          %p1727 = pneg %p133
        $region46: #{tpu_custom_call.1} parent=43 // pred_check_branch
          %1729 = sbr.rel (%p1727) target = $region48
        $region47: #{tpu_custom_call.1} parent=43 // pred_region
          %s1730 = sand.u32 %s118, 1
          %s1731 = scalar_lea.sflag [#allocation4], %s1730
          %s1732 = sand.u32 %s118, 1
          %s1733 = smul.addr %s1732, 64
          %s1734 = scalar_lea.vmem [#allocation3], %s1733
          %1735 = dma.done %s1731, 1024
        $region48: #{tpu_custom_call.1} parent=43 // pred_fallthru
          _
      $region44: #{tpu_custom_call.1} parent=5 // pred_fallthru
        _
    $region6: #{tpu_custom_call.1} parent=1 // loop_footer
      %s16 = sadd.s32 1, %s12
    $region7: #{tpu_custom_call.1} parent=1 // loop_footer_branch
      %11 = sbr.rel target = $region3
    $region8: #{tpu_custom_call.1} parent=1 // loop_exit
      _
    %1736 = vsyncpa [#allocation4], 1
    %s1737 = scalar_lea.sflag [#allocation4], 1
    %1738 = vsyncpa %s1737, 1

</llo_original>
